<compile_context>
chip_gen: v6e
topology: v6e:2x2x1
jax: 0.10.0
libtpu: 0.0.40
codegen_flags: <defaults>
</compile_context>

<pallas_src>
import functools

import jax
import jax.numpy as jnp
import numpy as np
from jax.experimental import pallas as pl
from jax.experimental.pallas import tpu as pltpu

EPS = 1e-5


def preact_kernel(x_ref, hid_ref, wid_ref, w1_ref, w2_ref,
                  g1_ref, b1_ref, g2_ref, b2_ref, o_ref, *, H, W):
    Cp, NHW = x_ref.shape
    x = x_ref[...]                      # (Cp, NHW) f32, lane-dense
    h_idx = hid_ref[...]                # (1, NHW) int32
    w_idx = wid_ref[...]                # (1, NHW) int32
    inv_n = jnp.float32(1.0 / NHW)

    def bn_relu(v, gamma, beta):
        # Training-mode batch stats, biased variance, fused single pass.
        mean = jnp.sum(v, axis=1, keepdims=True) * inv_n            # (Cp, 1)
        ex2 = jnp.sum(v * v, axis=1, keepdims=True) * inv_n
        var = ex2 - mean * mean
        scale = gamma * jax.lax.rsqrt(var + EPS)                    # (Cp, 1)
        shift = beta - mean * scale
        return jnp.maximum(v * scale + shift, 0.0)                  # (Cp, NHW)

    def conv3x3(v, w_t):
        # v: (Cp, NHW); w_t: (Cp, 9*Cp), taps flattened in (ky, kx, ci) order.
        # 3x3 "same" conv = 9 masked lane-rolls stacked into one K=9*Cp matmul.
        taps = []
        for dy in (-1, 0, 1):
            hmask = ((h_idx + dy) >= 0) & ((h_idx + dy) < H)
            for dx in (-1, 0, 1):
                wmask = ((w_idx + dx) >= 0) & ((w_idx + dx) < W)
                off = dy * W + dx
                shifted = v if off == 0 else pltpu.roll(
                    v, shift=(-off) % NHW, axis=1)
                taps.append(jnp.where(hmask & wmask, shifted, 0.0))
        patches = jnp.concatenate(taps, axis=0)                     # (9*Cp, NHW)
        return jnp.dot(w_t, patches, preferred_element_type=jnp.float32)

    o1 = bn_relu(x, g1_ref[...], b1_ref[...])
    c1 = conv3x3(o1, w1_ref[...])
    o2 = bn_relu(c1, g2_ref[...], b2_ref[...])
    c2 = conv3x3(o2, w2_ref[...])
    o_ref[...] = c2 + x                                             # identity shortcut


def preact_block(x_nchw, w1, w2, g1, b1, g2, b2):
    N, Cin, H, W = x_nchw.shape
    Cout = w1.shape[-1]
    assert Cin == Cout and w1.shape[:2] == (3, 3), \
        "identity-shortcut configuration only"
    NHW = N * H * W
    Cp = ((max(Cin, Cout) + 7) // 8) * 8      # pad channels to a full sublane tile

    # NCHW -> (Cp, N*H*W): channels on sublanes, flattened spatial on lanes.
    x_flat = jnp.transpose(x_nchw.astype(jnp.float32), (1, 0, 2, 3)).reshape(Cin, NHW)
    x_flat = jnp.pad(x_flat, ((0, Cp - Cin), (0, 0)))

    def pad_w(w):  # HWIO (3,3,ci,co) -> (Cp, 9*Cp), taps in (ky,kx,ci) order
        ci, co = w.shape[2], w.shape[3]
        wp = jnp.pad(w.astype(jnp.float32),
                     ((0, 0), (0, 0), (0, Cp - ci), (0, Cp - co)))
        return wp.reshape(9 * Cp, Cp).T

    def pad_gb(v, c):  # -> (Cp, 1); padded channels get gamma=beta=0 (stay zero)
        v = jnp.asarray(v, jnp.float32).reshape(c, 1)
        return jnp.pad(v, ((0, Cp - c), (0, 0)))

    w1t, w2t = pad_w(w1), pad_w(w2)
    g1p, b1p = pad_gb(g1, Cin), pad_gb(b1, Cin)
    g2p, b2p = pad_gb(g2, Cout), pad_gb(b2, Cout)

    # Per-pixel (h, w) coordinates along the flattened-spatial lane axis,
    # used for the conv boundary masks (precomputed: no int div/mod in-kernel).
    hw = jnp.arange(NHW, dtype=jnp.int32)
    hid = ((hw // W) % H).reshape(1, NHW)
    wid = (hw % W).reshape(1, NHW)

    out_flat = pl.pallas_call(
        functools.partial(preact_kernel, H=H, W=W),
        out_shape=jax.ShapeDtypeStruct((Cp, NHW), jnp.float32),
        in_specs=[pl.BlockSpec(memory_space=pltpu.MemorySpace.VMEM)] * 9,
        out_specs=pl.BlockSpec(memory_space=pltpu.MemorySpace.VMEM),
    )(x_flat, hid, wid, w1t, w2t, g1p, b1p, g2p, b2p)

    # (Cp, NHW) -> NCHW, dropping the channel padding.
    return jnp.transpose(out_flat[:Cout].reshape(Cout, N, H, W), (1, 0, 2, 3))


def reference_block(x_nchw, w1, w2, g1, b1, g2, b2):
    """Pure-JAX reference of the same forward for verification."""
    x = jnp.transpose(x_nchw, (0, 2, 3, 1)).astype(jnp.float32)

    def bn_relu(v, g, b):
        mean = jnp.mean(v, axis=(0, 1, 2), keepdims=True)
        var = jnp.mean((v - mean) ** 2, axis=(0, 1, 2), keepdims=True)
        y = (v - mean) / jnp.sqrt(var + EPS)
        y = y * g.reshape(1, 1, 1, -1) + b.reshape(1, 1, 1, -1)
        return jnp.maximum(y, 0.0)

    def conv(v, w):
        return jax.lax.conv_general_dilated(
            v, w, window_strides=(1, 1), padding="SAME",
            dimension_numbers=("NHWC", "HWIO", "NHWC"))

    o1 = bn_relu(x, g1, b1)
    c1 = conv(o1, w1)
    o2 = bn_relu(c1, g2, b2)
    c2 = conv(o2, w2)
    return jnp.transpose(c2 + x, (0, 3, 1, 2))


if __name__ == "__main__":
    N, C, H, W = 2, 4, 16, 16           # in_planes = planes = 4, stride = 1
    planes = C

    key = jax.random.PRNGKey(0)
    kx, kw1, kw2 = jax.random.split(key, 3)

    x = jax.random.normal(kx, (N, C, H, W), dtype=jnp.float32)

    # Conv weights (HWIO layout for the kernel); deterministic init.
    w1 = 0.1 * jax.random.normal(kw1, (3, 3, C, planes), dtype=jnp.float32)
    w2 = 0.1 * jax.random.normal(kw2, (3, 3, planes, planes), dtype=jnp.float32)

    # BatchNorm affine params: PyTorch init (gamma=1, beta=0), shaped (1, C).
    g1 = jnp.ones((1, C), jnp.float32)
    b1 = jnp.zeros((1, C), jnp.float32)
    g2 = jnp.ones((1, planes), jnp.float32)
    b2 = jnp.zeros((1, planes), jnp.float32)

    out = preact_block(x, w1, w2, g1, b1, g2, b2)
    out = jax.block_until_ready(out)

    ref = jax.block_until_ready(reference_block(x, w1, w2, g1, b1, g2, b2))
    np.testing.assert_allclose(np.asarray(out), np.asarray(ref),
                               rtol=1e-4, atol=1e-4)

    print("KERNEL_OK")
</pallas_src>

<mosaic_0001>
module attributes {stable_mosaic.version = 11 : i64} {
  func.func @preact_kernel(%arg0: memref<8x512xf32, #tpu.memory_space<vmem>>, %arg1: memref<1x512xi32, #tpu.memory_space<vmem>>, %arg2: memref<1x512xi32, #tpu.memory_space<vmem>>, %arg3: memref<8x72xf32, #tpu.memory_space<vmem>>, %arg4: memref<8x72xf32, #tpu.memory_space<vmem>>, %arg5: memref<8x1xf32, #tpu.memory_space<vmem>>, %arg6: memref<8x1xf32, #tpu.memory_space<vmem>>, %arg7: memref<8x1xf32, #tpu.memory_space<vmem>>, %arg8: memref<8x1xf32, #tpu.memory_space<vmem>>, %arg9: memref<8x512xf32, #tpu.memory_space<vmem>>) attributes {dimension_semantics = [], scalar_prefetch = 0 : i64, scratch_operands = 0 : i64, tpu.core_type = #tpu.core_type<tc>} {
    %c0 = arith.constant 0 : index
    %c0_0 = arith.constant 0 : index
    %0 = vector.load %arg0[%c0, %c0_0] : memref<8x512xf32, #tpu.memory_space<vmem>>, vector<8x512xf32>
    %c0_1 = arith.constant 0 : index
    %c0_2 = arith.constant 0 : index
    %1 = vector.load %arg1[%c0_1, %c0_2] : memref<1x512xi32, #tpu.memory_space<vmem>>, vector<1x512xi32>
    %c0_3 = arith.constant 0 : index
    %c0_4 = arith.constant 0 : index
    %2 = vector.load %arg2[%c0_3, %c0_4] : memref<1x512xi32, #tpu.memory_space<vmem>>, vector<1x512xi32>
    %c0_5 = arith.constant 0 : index
    %c0_6 = arith.constant 0 : index
    %3 = vector.load %arg5[%c0_5, %c0_6] : memref<8x1xf32, #tpu.memory_space<vmem>>, vector<8x1xf32>
    %c0_7 = arith.constant 0 : index
    %c0_8 = arith.constant 0 : index
    %4 = vector.load %arg6[%c0_7, %c0_8] : memref<8x1xf32, #tpu.memory_space<vmem>>, vector<8x1xf32>
    %cst = arith.constant dense<0.000000e+00> : vector<8xf32>
    %5 = vector.multi_reduction <add>, %0, %cst [1] : vector<8x512xf32> to vector<8xf32>
    %6 = vector.shape_cast %5 : vector<8xf32> to vector<8x1xf32>
    %cst_9 = arith.constant 0.001953125 : f32
    %7 = vector.broadcast %cst_9 : f32 to vector<8x1xf32>
    %8 = arith.mulf %6, %7 : vector<8x1xf32>
    %9 = arith.mulf %0, %0 : vector<8x512xf32>
    %cst_10 = arith.constant dense<0.000000e+00> : vector<8xf32>
    %10 = vector.multi_reduction <add>, %9, %cst_10 [1] : vector<8x512xf32> to vector<8xf32>
    %11 = vector.shape_cast %10 : vector<8xf32> to vector<8x1xf32>
    %cst_11 = arith.constant 0.001953125 : f32
    %12 = vector.broadcast %cst_11 : f32 to vector<8x1xf32>
    %13 = arith.mulf %11, %12 : vector<8x1xf32>
    %14 = arith.mulf %8, %8 : vector<8x1xf32>
    %15 = arith.subf %13, %14 : vector<8x1xf32>
    %cst_12 = arith.constant 9.99999974E-6 : f32
    %16 = vector.broadcast %cst_12 : f32 to vector<8x1xf32>
    %17 = arith.addf %15, %16 : vector<8x1xf32>
    %18 = math.rsqrt %17 : vector<8x1xf32>
    %19 = arith.mulf %3, %18 : vector<8x1xf32>
    %20 = arith.mulf %8, %19 : vector<8x1xf32>
    %21 = arith.subf %4, %20 : vector<8x1xf32>
    %22 = vector.broadcast %19 : vector<8x1xf32> to vector<8x512xf32>
    %23 = arith.mulf %0, %22 : vector<8x512xf32>
    %24 = vector.broadcast %21 : vector<8x1xf32> to vector<8x512xf32>
    %25 = arith.addf %23, %24 : vector<8x512xf32>
    %cst_13 = arith.constant 0.000000e+00 : f32
    %26 = vector.broadcast %cst_13 : f32 to vector<8x512xf32>
    %27 = arith.maximumf %25, %26 : vector<8x512xf32>
    %c0_14 = arith.constant 0 : index
    %c0_15 = arith.constant 0 : index
    %28 = vector.load %arg3[%c0_14, %c0_15] : memref<8x72xf32, #tpu.memory_space<vmem>>, vector<8x72xf32>
    %c-1_i32 = arith.constant -1 : i32
    %29 = vector.broadcast %c-1_i32 : i32 to vector<1x512xi32>
    %30 = arith.addi %1, %29 : vector<1x512xi32>
    %c0_i32 = arith.constant 0 : i32
    %31 = vector.broadcast %c0_i32 : i32 to vector<1x512xi32>
    %32 = arith.cmpi sge, %30, %31 : vector<1x512xi32>
    %c-1_i32_16 = arith.constant -1 : i32
    %33 = vector.broadcast %c-1_i32_16 : i32 to vector<1x512xi32>
    %34 = arith.addi %1, %33 : vector<1x512xi32>
    %c16_i32 = arith.constant 16 : i32
    %35 = vector.broadcast %c16_i32 : i32 to vector<1x512xi32>
    %36 = arith.cmpi slt, %34, %35 : vector<1x512xi32>
    %37 = arith.andi %32, %36 : vector<1x512xi1>
    %c-1_i32_17 = arith.constant -1 : i32
    %38 = vector.broadcast %c-1_i32_17 : i32 to vector<1x512xi32>
    %39 = arith.addi %2, %38 : vector<1x512xi32>
    %c0_i32_18 = arith.constant 0 : i32
    %40 = vector.broadcast %c0_i32_18 : i32 to vector<1x512xi32>
    %41 = arith.cmpi sge, %39, %40 : vector<1x512xi32>
    %c-1_i32_19 = arith.constant -1 : i32
    %42 = vector.broadcast %c-1_i32_19 : i32 to vector<1x512xi32>
    %43 = arith.addi %2, %42 : vector<1x512xi32>
    %c16_i32_20 = arith.constant 16 : i32
    %44 = vector.broadcast %c16_i32_20 : i32 to vector<1x512xi32>
    %45 = arith.cmpi slt, %43, %44 : vector<1x512xi32>
    %46 = arith.andi %41, %45 : vector<1x512xi1>
    %c17_i32 = arith.constant 17 : i32
    %47 = tpu.dynamic_rotate %27 by %c17_i32 dim 1 : vector<8x512xf32>, i32 -> vector<8x512xf32>
    %48 = arith.andi %37, %46 : vector<1x512xi1>
    %cst_21 = arith.constant 0.000000e+00 : f32
    %49 = vector.shape_cast %48 : vector<1x512xi1> to vector<1x512xi1>
    %50 = vector.broadcast %49 : vector<1x512xi1> to vector<8x512xi1>
    %51 = vector.broadcast %cst_21 : f32 to vector<8x512xf32>
    %52 = arith.select %50, %47, %51 : vector<8x512xi1>, vector<8x512xf32>
    %c0_i32_22 = arith.constant 0 : i32
    %53 = vector.broadcast %c0_i32_22 : i32 to vector<1x512xi32>
    %54 = arith.addi %2, %53 : vector<1x512xi32>
    %c0_i32_23 = arith.constant 0 : i32
    %55 = vector.broadcast %c0_i32_23 : i32 to vector<1x512xi32>
    %56 = arith.cmpi sge, %54, %55 : vector<1x512xi32>
    %c0_i32_24 = arith.constant 0 : i32
    %57 = vector.broadcast %c0_i32_24 : i32 to vector<1x512xi32>
    %58 = arith.addi %2, %57 : vector<1x512xi32>
    %c16_i32_25 = arith.constant 16 : i32
    %59 = vector.broadcast %c16_i32_25 : i32 to vector<1x512xi32>
    %60 = arith.cmpi slt, %58, %59 : vector<1x512xi32>
    %61 = arith.andi %56, %60 : vector<1x512xi1>
    %c16_i32_26 = arith.constant 16 : i32
    %62 = tpu.dynamic_rotate %27 by %c16_i32_26 dim 1 : vector<8x512xf32>, i32 -> vector<8x512xf32>
    %63 = arith.andi %37, %61 : vector<1x512xi1>
    %cst_27 = arith.constant 0.000000e+00 : f32
    %64 = vector.shape_cast %63 : vector<1x512xi1> to vector<1x512xi1>
    %65 = vector.broadcast %64 : vector<1x512xi1> to vector<8x512xi1>
    %66 = vector.broadcast %cst_27 : f32 to vector<8x512xf32>
    %67 = arith.select %65, %62, %66 : vector<8x512xi1>, vector<8x512xf32>
    %c1_i32 = arith.constant 1 : i32
    %68 = vector.broadcast %c1_i32 : i32 to vector<1x512xi32>
    %69 = arith.addi %2, %68 : vector<1x512xi32>
    %c0_i32_28 = arith.constant 0 : i32
    %70 = vector.broadcast %c0_i32_28 : i32 to vector<1x512xi32>
    %71 = arith.cmpi sge, %69, %70 : vector<1x512xi32>
    %c1_i32_29 = arith.constant 1 : i32
    %72 = vector.broadcast %c1_i32_29 : i32 to vector<1x512xi32>
    %73 = arith.addi %2, %72 : vector<1x512xi32>
    %c16_i32_30 = arith.constant 16 : i32
    %74 = vector.broadcast %c16_i32_30 : i32 to vector<1x512xi32>
    %75 = arith.cmpi slt, %73, %74 : vector<1x512xi32>
    %76 = arith.andi %71, %75 : vector<1x512xi1>
    %c15_i32 = arith.constant 15 : i32
    %77 = tpu.dynamic_rotate %27 by %c15_i32 dim 1 : vector<8x512xf32>, i32 -> vector<8x512xf32>
    %78 = arith.andi %37, %76 : vector<1x512xi1>
    %cst_31 = arith.constant 0.000000e+00 : f32
    %79 = vector.shape_cast %78 : vector<1x512xi1> to vector<1x512xi1>
    %80 = vector.broadcast %79 : vector<1x512xi1> to vector<8x512xi1>
    %81 = vector.broadcast %cst_31 : f32 to vector<8x512xf32>
    %82 = arith.select %80, %77, %81 : vector<8x512xi1>, vector<8x512xf32>
    %c0_i32_32 = arith.constant 0 : i32
    %83 = vector.broadcast %c0_i32_32 : i32 to vector<1x512xi32>
    %84 = arith.addi %1, %83 : vector<1x512xi32>
    %c0_i32_33 = arith.constant 0 : i32
    %85 = vector.broadcast %c0_i32_33 : i32 to vector<1x512xi32>
    %86 = arith.cmpi sge, %84, %85 : vector<1x512xi32>
    %c0_i32_34 = arith.constant 0 : i32
    %87 = vector.broadcast %c0_i32_34 : i32 to vector<1x512xi32>
    %88 = arith.addi %1, %87 : vector<1x512xi32>
    %c16_i32_35 = arith.constant 16 : i32
    %89 = vector.broadcast %c16_i32_35 : i32 to vector<1x512xi32>
    %90 = arith.cmpi slt, %88, %89 : vector<1x512xi32>
    %91 = arith.andi %86, %90 : vector<1x512xi1>
    %c-1_i32_36 = arith.constant -1 : i32
    %92 = vector.broadcast %c-1_i32_36 : i32 to vector<1x512xi32>
    %93 = arith.addi %2, %92 : vector<1x512xi32>
    %c0_i32_37 = arith.constant 0 : i32
    %94 = vector.broadcast %c0_i32_37 : i32 to vector<1x512xi32>
    %95 = arith.cmpi sge, %93, %94 : vector<1x512xi32>
    %c-1_i32_38 = arith.constant -1 : i32
    %96 = vector.broadcast %c-1_i32_38 : i32 to vector<1x512xi32>
    %97 = arith.addi %2, %96 : vector<1x512xi32>
    %c16_i32_39 = arith.constant 16 : i32
    %98 = vector.broadcast %c16_i32_39 : i32 to vector<1x512xi32>
    %99 = arith.cmpi slt, %97, %98 : vector<1x512xi32>
    %100 = arith.andi %95, %99 : vector<1x512xi1>
    %c1_i32_40 = arith.constant 1 : i32
    %101 = tpu.dynamic_rotate %27 by %c1_i32_40 dim 1 : vector<8x512xf32>, i32 -> vector<8x512xf32>
    %102 = arith.andi %91, %100 : vector<1x512xi1>
    %cst_41 = arith.constant 0.000000e+00 : f32
    %103 = vector.shape_cast %102 : vector<1x512xi1> to vector<1x512xi1>
    %104 = vector.broadcast %103 : vector<1x512xi1> to vector<8x512xi1>
    %105 = vector.broadcast %cst_41 : f32 to vector<8x512xf32>
    %106 = arith.select %104, %101, %105 : vector<8x512xi1>, vector<8x512xf32>
    %c0_i32_42 = arith.constant 0 : i32
    %107 = vector.broadcast %c0_i32_42 : i32 to vector<1x512xi32>
    %108 = arith.addi %2, %107 : vector<1x512xi32>
    %c0_i32_43 = arith.constant 0 : i32
    %109 = vector.broadcast %c0_i32_43 : i32 to vector<1x512xi32>
    %110 = arith.cmpi sge, %108, %109 : vector<1x512xi32>
    %c0_i32_44 = arith.constant 0 : i32
    %111 = vector.broadcast %c0_i32_44 : i32 to vector<1x512xi32>
    %112 = arith.addi %2, %111 : vector<1x512xi32>
    %c16_i32_45 = arith.constant 16 : i32
    %113 = vector.broadcast %c16_i32_45 : i32 to vector<1x512xi32>
    %114 = arith.cmpi slt, %112, %113 : vector<1x512xi32>
    %115 = arith.andi %110, %114 : vector<1x512xi1>
    %116 = arith.andi %91, %115 : vector<1x512xi1>
    %cst_46 = arith.constant 0.000000e+00 : f32
    %117 = vector.shape_cast %116 : vector<1x512xi1> to vector<1x512xi1>
    %118 = vector.broadcast %117 : vector<1x512xi1> to vector<8x512xi1>
    %119 = vector.broadcast %cst_46 : f32 to vector<8x512xf32>
    %120 = arith.select %118, %27, %119 : vector<8x512xi1>, vector<8x512xf32>
    %c1_i32_47 = arith.constant 1 : i32
    %121 = vector.broadcast %c1_i32_47 : i32 to vector<1x512xi32>
    %122 = arith.addi %2, %121 : vector<1x512xi32>
    %c0_i32_48 = arith.constant 0 : i32
    %123 = vector.broadcast %c0_i32_48 : i32 to vector<1x512xi32>
    %124 = arith.cmpi sge, %122, %123 : vector<1x512xi32>
    %c1_i32_49 = arith.constant 1 : i32
    %125 = vector.broadcast %c1_i32_49 : i32 to vector<1x512xi32>
    %126 = arith.addi %2, %125 : vector<1x512xi32>
    %c16_i32_50 = arith.constant 16 : i32
    %127 = vector.broadcast %c16_i32_50 : i32 to vector<1x512xi32>
    %128 = arith.cmpi slt, %126, %127 : vector<1x512xi32>
    %129 = arith.andi %124, %128 : vector<1x512xi1>
    %c511_i32 = arith.constant 511 : i32
    %130 = tpu.dynamic_rotate %27 by %c511_i32 dim 1 : vector<8x512xf32>, i32 -> vector<8x512xf32>
    %131 = arith.andi %91, %129 : vector<1x512xi1>
    %cst_51 = arith.constant 0.000000e+00 : f32
    %132 = vector.shape_cast %131 : vector<1x512xi1> to vector<1x512xi1>
    %133 = vector.broadcast %132 : vector<1x512xi1> to vector<8x512xi1>
    %134 = vector.broadcast %cst_51 : f32 to vector<8x512xf32>
    %135 = arith.select %133, %130, %134 : vector<8x512xi1>, vector<8x512xf32>
    %c1_i32_52 = arith.constant 1 : i32
    %136 = vector.broadcast %c1_i32_52 : i32 to vector<1x512xi32>
    %137 = arith.addi %1, %136 : vector<1x512xi32>
    %c0_i32_53 = arith.constant 0 : i32
    %138 = vector.broadcast %c0_i32_53 : i32 to vector<1x512xi32>
    %139 = arith.cmpi sge, %137, %138 : vector<1x512xi32>
    %c1_i32_54 = arith.constant 1 : i32
    %140 = vector.broadcast %c1_i32_54 : i32 to vector<1x512xi32>
    %141 = arith.addi %1, %140 : vector<1x512xi32>
    %c16_i32_55 = arith.constant 16 : i32
    %142 = vector.broadcast %c16_i32_55 : i32 to vector<1x512xi32>
    %143 = arith.cmpi slt, %141, %142 : vector<1x512xi32>
    %144 = arith.andi %139, %143 : vector<1x512xi1>
    %c-1_i32_56 = arith.constant -1 : i32
    %145 = vector.broadcast %c-1_i32_56 : i32 to vector<1x512xi32>
    %146 = arith.addi %2, %145 : vector<1x512xi32>
    %c0_i32_57 = arith.constant 0 : i32
    %147 = vector.broadcast %c0_i32_57 : i32 to vector<1x512xi32>
    %148 = arith.cmpi sge, %146, %147 : vector<1x512xi32>
    %c-1_i32_58 = arith.constant -1 : i32
    %149 = vector.broadcast %c-1_i32_58 : i32 to vector<1x512xi32>
    %150 = arith.addi %2, %149 : vector<1x512xi32>
    %c16_i32_59 = arith.constant 16 : i32
    %151 = vector.broadcast %c16_i32_59 : i32 to vector<1x512xi32>
    %152 = arith.cmpi slt, %150, %151 : vector<1x512xi32>
    %153 = arith.andi %148, %152 : vector<1x512xi1>
    %c497_i32 = arith.constant 497 : i32
    %154 = tpu.dynamic_rotate %27 by %c497_i32 dim 1 : vector<8x512xf32>, i32 -> vector<8x512xf32>
    %155 = arith.andi %144, %153 : vector<1x512xi1>
    %cst_60 = arith.constant 0.000000e+00 : f32
    %156 = vector.shape_cast %155 : vector<1x512xi1> to vector<1x512xi1>
    %157 = vector.broadcast %156 : vector<1x512xi1> to vector<8x512xi1>
    %158 = vector.broadcast %cst_60 : f32 to vector<8x512xf32>
    %159 = arith.select %157, %154, %158 : vector<8x512xi1>, vector<8x512xf32>
    %c0_i32_61 = arith.constant 0 : i32
    %160 = vector.broadcast %c0_i32_61 : i32 to vector<1x512xi32>
    %161 = arith.addi %2, %160 : vector<1x512xi32>
    %c0_i32_62 = arith.constant 0 : i32
    %162 = vector.broadcast %c0_i32_62 : i32 to vector<1x512xi32>
    %163 = arith.cmpi sge, %161, %162 : vector<1x512xi32>
    %c0_i32_63 = arith.constant 0 : i32
    %164 = vector.broadcast %c0_i32_63 : i32 to vector<1x512xi32>
    %165 = arith.addi %2, %164 : vector<1x512xi32>
    %c16_i32_64 = arith.constant 16 : i32
    %166 = vector.broadcast %c16_i32_64 : i32 to vector<1x512xi32>
    %167 = arith.cmpi slt, %165, %166 : vector<1x512xi32>
    %168 = arith.andi %163, %167 : vector<1x512xi1>
    %c496_i32 = arith.constant 496 : i32
    %169 = tpu.dynamic_rotate %27 by %c496_i32 dim 1 : vector<8x512xf32>, i32 -> vector<8x512xf32>
    %170 = arith.andi %144, %168 : vector<1x512xi1>
    %cst_65 = arith.constant 0.000000e+00 : f32
    %171 = vector.shape_cast %170 : vector<1x512xi1> to vector<1x512xi1>
    %172 = vector.broadcast %171 : vector<1x512xi1> to vector<8x512xi1>
    %173 = vector.broadcast %cst_65 : f32 to vector<8x512xf32>
    %174 = arith.select %172, %169, %173 : vector<8x512xi1>, vector<8x512xf32>
    %c1_i32_66 = arith.constant 1 : i32
    %175 = vector.broadcast %c1_i32_66 : i32 to vector<1x512xi32>
    %176 = arith.addi %2, %175 : vector<1x512xi32>
    %c0_i32_67 = arith.constant 0 : i32
    %177 = vector.broadcast %c0_i32_67 : i32 to vector<1x512xi32>
    %178 = arith.cmpi sge, %176, %177 : vector<1x512xi32>
    %c1_i32_68 = arith.constant 1 : i32
    %179 = vector.broadcast %c1_i32_68 : i32 to vector<1x512xi32>
    %180 = arith.addi %2, %179 : vector<1x512xi32>
    %c16_i32_69 = arith.constant 16 : i32
    %181 = vector.broadcast %c16_i32_69 : i32 to vector<1x512xi32>
    %182 = arith.cmpi slt, %180, %181 : vector<1x512xi32>
    %183 = arith.andi %178, %182 : vector<1x512xi1>
    %c495_i32 = arith.constant 495 : i32
    %184 = tpu.dynamic_rotate %27 by %c495_i32 dim 1 : vector<8x512xf32>, i32 -> vector<8x512xf32>
    %185 = arith.andi %144, %183 : vector<1x512xi1>
    %cst_70 = arith.constant 0.000000e+00 : f32
    %186 = vector.shape_cast %185 : vector<1x512xi1> to vector<1x512xi1>
    %187 = vector.broadcast %186 : vector<1x512xi1> to vector<8x512xi1>
    %188 = vector.broadcast %cst_70 : f32 to vector<8x512xf32>
    %189 = arith.select %187, %184, %188 : vector<8x512xi1>, vector<8x512xf32>
    %190 = tpu.concatenate %52, %67, %82, %106, %120, %135, %159, %174, %189 in 0 : vector<8x512xf32>, vector<8x512xf32>, vector<8x512xf32>, vector<8x512xf32>, vector<8x512xf32>, vector<8x512xf32>, vector<8x512xf32>, vector<8x512xf32>, vector<8x512xf32> -> vector<72x512xf32>
    %cst_71 = arith.constant dense<0.000000e+00> : vector<8x512xf32>
    %191 = tpu.matmul %28, %190, %cst_71 {dimension_numbers = #tpu.dot_dimension_numbers<[1], [0], [0], [1], [0, 0, 1, 1], [], []>} : vector<8x72xf32>, vector<72x512xf32>, vector<8x512xf32> -> vector<8x512xf32>
    %c0_72 = arith.constant 0 : index
    %c0_73 = arith.constant 0 : index
    %192 = vector.load %arg7[%c0_72, %c0_73] : memref<8x1xf32, #tpu.memory_space<vmem>>, vector<8x1xf32>
    %c0_74 = arith.constant 0 : index
    %c0_75 = arith.constant 0 : index
    %193 = vector.load %arg8[%c0_74, %c0_75] : memref<8x1xf32, #tpu.memory_space<vmem>>, vector<8x1xf32>
    %cst_76 = arith.constant dense<0.000000e+00> : vector<8xf32>
    %194 = vector.multi_reduction <add>, %191, %cst_76 [1] : vector<8x512xf32> to vector<8xf32>
    %195 = vector.shape_cast %194 : vector<8xf32> to vector<8x1xf32>
    %cst_77 = arith.constant 0.001953125 : f32
    %196 = vector.broadcast %cst_77 : f32 to vector<8x1xf32>
    %197 = arith.mulf %195, %196 : vector<8x1xf32>
    %198 = arith.mulf %191, %191 : vector<8x512xf32>
    %cst_78 = arith.constant dense<0.000000e+00> : vector<8xf32>
    %199 = vector.multi_reduction <add>, %198, %cst_78 [1] : vector<8x512xf32> to vector<8xf32>
    %200 = vector.shape_cast %199 : vector<8xf32> to vector<8x1xf32>
    %cst_79 = arith.constant 0.001953125 : f32
    %201 = vector.broadcast %cst_79 : f32 to vector<8x1xf32>
    %202 = arith.mulf %200, %201 : vector<8x1xf32>
    %203 = arith.mulf %197, %197 : vector<8x1xf32>
    %204 = arith.subf %202, %203 : vector<8x1xf32>
    %cst_80 = arith.constant 9.99999974E-6 : f32
    %205 = vector.broadcast %cst_80 : f32 to vector<8x1xf32>
    %206 = arith.addf %204, %205 : vector<8x1xf32>
    %207 = math.rsqrt %206 : vector<8x1xf32>
    %208 = arith.mulf %192, %207 : vector<8x1xf32>
    %209 = arith.mulf %197, %208 : vector<8x1xf32>
    %210 = arith.subf %193, %209 : vector<8x1xf32>
    %211 = vector.broadcast %208 : vector<8x1xf32> to vector<8x512xf32>
    %212 = arith.mulf %191, %211 : vector<8x512xf32>
    %213 = vector.broadcast %210 : vector<8x1xf32> to vector<8x512xf32>
    %214 = arith.addf %212, %213 : vector<8x512xf32>
    %cst_81 = arith.constant 0.000000e+00 : f32
    %215 = vector.broadcast %cst_81 : f32 to vector<8x512xf32>
    %216 = arith.maximumf %214, %215 : vector<8x512xf32>
    %c0_82 = arith.constant 0 : index
    %c0_83 = arith.constant 0 : index
    %217 = vector.load %arg4[%c0_82, %c0_83] : memref<8x72xf32, #tpu.memory_space<vmem>>, vector<8x72xf32>
    %c-1_i32_84 = arith.constant -1 : i32
    %218 = vector.broadcast %c-1_i32_84 : i32 to vector<1x512xi32>
    %219 = arith.addi %1, %218 : vector<1x512xi32>
    %c0_i32_85 = arith.constant 0 : i32
    %220 = vector.broadcast %c0_i32_85 : i32 to vector<1x512xi32>
    %221 = arith.cmpi sge, %219, %220 : vector<1x512xi32>
    %c-1_i32_86 = arith.constant -1 : i32
    %222 = vector.broadcast %c-1_i32_86 : i32 to vector<1x512xi32>
    %223 = arith.addi %1, %222 : vector<1x512xi32>
    %c16_i32_87 = arith.constant 16 : i32
    %224 = vector.broadcast %c16_i32_87 : i32 to vector<1x512xi32>
    %225 = arith.cmpi slt, %223, %224 : vector<1x512xi32>
    %226 = arith.andi %221, %225 : vector<1x512xi1>
    %c-1_i32_88 = arith.constant -1 : i32
    %227 = vector.broadcast %c-1_i32_88 : i32 to vector<1x512xi32>
    %228 = arith.addi %2, %227 : vector<1x512xi32>
    %c0_i32_89 = arith.constant 0 : i32
    %229 = vector.broadcast %c0_i32_89 : i32 to vector<1x512xi32>
    %230 = arith.cmpi sge, %228, %229 : vector<1x512xi32>
    %c-1_i32_90 = arith.constant -1 : i32
    %231 = vector.broadcast %c-1_i32_90 : i32 to vector<1x512xi32>
    %232 = arith.addi %2, %231 : vector<1x512xi32>
    %c16_i32_91 = arith.constant 16 : i32
    %233 = vector.broadcast %c16_i32_91 : i32 to vector<1x512xi32>
    %234 = arith.cmpi slt, %232, %233 : vector<1x512xi32>
    %235 = arith.andi %230, %234 : vector<1x512xi1>
    %c17_i32_92 = arith.constant 17 : i32
    %236 = tpu.dynamic_rotate %216 by %c17_i32_92 dim 1 : vector<8x512xf32>, i32 -> vector<8x512xf32>
    %237 = arith.andi %226, %235 : vector<1x512xi1>
    %cst_93 = arith.constant 0.000000e+00 : f32
    %238 = vector.shape_cast %237 : vector<1x512xi1> to vector<1x512xi1>
    %239 = vector.broadcast %238 : vector<1x512xi1> to vector<8x512xi1>
    %240 = vector.broadcast %cst_93 : f32 to vector<8x512xf32>
    %241 = arith.select %239, %236, %240 : vector<8x512xi1>, vector<8x512xf32>
    %c0_i32_94 = arith.constant 0 : i32
    %242 = vector.broadcast %c0_i32_94 : i32 to vector<1x512xi32>
    %243 = arith.addi %2, %242 : vector<1x512xi32>
    %c0_i32_95 = arith.constant 0 : i32
    %244 = vector.broadcast %c0_i32_95 : i32 to vector<1x512xi32>
    %245 = arith.cmpi sge, %243, %244 : vector<1x512xi32>
    %c0_i32_96 = arith.constant 0 : i32
    %246 = vector.broadcast %c0_i32_96 : i32 to vector<1x512xi32>
    %247 = arith.addi %2, %246 : vector<1x512xi32>
    %c16_i32_97 = arith.constant 16 : i32
    %248 = vector.broadcast %c16_i32_97 : i32 to vector<1x512xi32>
    %249 = arith.cmpi slt, %247, %248 : vector<1x512xi32>
    %250 = arith.andi %245, %249 : vector<1x512xi1>
    %c16_i32_98 = arith.constant 16 : i32
    %251 = tpu.dynamic_rotate %216 by %c16_i32_98 dim 1 : vector<8x512xf32>, i32 -> vector<8x512xf32>
    %252 = arith.andi %226, %250 : vector<1x512xi1>
    %cst_99 = arith.constant 0.000000e+00 : f32
    %253 = vector.shape_cast %252 : vector<1x512xi1> to vector<1x512xi1>
    %254 = vector.broadcast %253 : vector<1x512xi1> to vector<8x512xi1>
    %255 = vector.broadcast %cst_99 : f32 to vector<8x512xf32>
    %256 = arith.select %254, %251, %255 : vector<8x512xi1>, vector<8x512xf32>
    %c1_i32_100 = arith.constant 1 : i32
    %257 = vector.broadcast %c1_i32_100 : i32 to vector<1x512xi32>
    %258 = arith.addi %2, %257 : vector<1x512xi32>
    %c0_i32_101 = arith.constant 0 : i32
    %259 = vector.broadcast %c0_i32_101 : i32 to vector<1x512xi32>
    %260 = arith.cmpi sge, %258, %259 : vector<1x512xi32>
    %c1_i32_102 = arith.constant 1 : i32
    %261 = vector.broadcast %c1_i32_102 : i32 to vector<1x512xi32>
    %262 = arith.addi %2, %261 : vector<1x512xi32>
    %c16_i32_103 = arith.constant 16 : i32
    %263 = vector.broadcast %c16_i32_103 : i32 to vector<1x512xi32>
    %264 = arith.cmpi slt, %262, %263 : vector<1x512xi32>
    %265 = arith.andi %260, %264 : vector<1x512xi1>
    %c15_i32_104 = arith.constant 15 : i32
    %266 = tpu.dynamic_rotate %216 by %c15_i32_104 dim 1 : vector<8x512xf32>, i32 -> vector<8x512xf32>
    %267 = arith.andi %226, %265 : vector<1x512xi1>
    %cst_105 = arith.constant 0.000000e+00 : f32
    %268 = vector.shape_cast %267 : vector<1x512xi1> to vector<1x512xi1>
    %269 = vector.broadcast %268 : vector<1x512xi1> to vector<8x512xi1>
    %270 = vector.broadcast %cst_105 : f32 to vector<8x512xf32>
    %271 = arith.select %269, %266, %270 : vector<8x512xi1>, vector<8x512xf32>
    %c0_i32_106 = arith.constant 0 : i32
    %272 = vector.broadcast %c0_i32_106 : i32 to vector<1x512xi32>
    %273 = arith.addi %1, %272 : vector<1x512xi32>
    %c0_i32_107 = arith.constant 0 : i32
    %274 = vector.broadcast %c0_i32_107 : i32 to vector<1x512xi32>
    %275 = arith.cmpi sge, %273, %274 : vector<1x512xi32>
    %c0_i32_108 = arith.constant 0 : i32
    %276 = vector.broadcast %c0_i32_108 : i32 to vector<1x512xi32>
    %277 = arith.addi %1, %276 : vector<1x512xi32>
    %c16_i32_109 = arith.constant 16 : i32
    %278 = vector.broadcast %c16_i32_109 : i32 to vector<1x512xi32>
    %279 = arith.cmpi slt, %277, %278 : vector<1x512xi32>
    %280 = arith.andi %275, %279 : vector<1x512xi1>
    %c-1_i32_110 = arith.constant -1 : i32
    %281 = vector.broadcast %c-1_i32_110 : i32 to vector<1x512xi32>
    %282 = arith.addi %2, %281 : vector<1x512xi32>
    %c0_i32_111 = arith.constant 0 : i32
    %283 = vector.broadcast %c0_i32_111 : i32 to vector<1x512xi32>
    %284 = arith.cmpi sge, %282, %283 : vector<1x512xi32>
    %c-1_i32_112 = arith.constant -1 : i32
    %285 = vector.broadcast %c-1_i32_112 : i32 to vector<1x512xi32>
    %286 = arith.addi %2, %285 : vector<1x512xi32>
    %c16_i32_113 = arith.constant 16 : i32
    %287 = vector.broadcast %c16_i32_113 : i32 to vector<1x512xi32>
    %288 = arith.cmpi slt, %286, %287 : vector<1x512xi32>
    %289 = arith.andi %284, %288 : vector<1x512xi1>
    %c1_i32_114 = arith.constant 1 : i32
    %290 = tpu.dynamic_rotate %216 by %c1_i32_114 dim 1 : vector<8x512xf32>, i32 -> vector<8x512xf32>
    %291 = arith.andi %280, %289 : vector<1x512xi1>
    %cst_115 = arith.constant 0.000000e+00 : f32
    %292 = vector.shape_cast %291 : vector<1x512xi1> to vector<1x512xi1>
    %293 = vector.broadcast %292 : vector<1x512xi1> to vector<8x512xi1>
    %294 = vector.broadcast %cst_115 : f32 to vector<8x512xf32>
    %295 = arith.select %293, %290, %294 : vector<8x512xi1>, vector<8x512xf32>
    %c0_i32_116 = arith.constant 0 : i32
    %296 = vector.broadcast %c0_i32_116 : i32 to vector<1x512xi32>
    %297 = arith.addi %2, %296 : vector<1x512xi32>
    %c0_i32_117 = arith.constant 0 : i32
    %298 = vector.broadcast %c0_i32_117 : i32 to vector<1x512xi32>
    %299 = arith.cmpi sge, %297, %298 : vector<1x512xi32>
    %c0_i32_118 = arith.constant 0 : i32
    %300 = vector.broadcast %c0_i32_118 : i32 to vector<1x512xi32>
    %301 = arith.addi %2, %300 : vector<1x512xi32>
    %c16_i32_119 = arith.constant 16 : i32
    %302 = vector.broadcast %c16_i32_119 : i32 to vector<1x512xi32>
    %303 = arith.cmpi slt, %301, %302 : vector<1x512xi32>
    %304 = arith.andi %299, %303 : vector<1x512xi1>
    %305 = arith.andi %280, %304 : vector<1x512xi1>
    %cst_120 = arith.constant 0.000000e+00 : f32
    %306 = vector.shape_cast %305 : vector<1x512xi1> to vector<1x512xi1>
    %307 = vector.broadcast %306 : vector<1x512xi1> to vector<8x512xi1>
    %308 = vector.broadcast %cst_120 : f32 to vector<8x512xf32>
    %309 = arith.select %307, %216, %308 : vector<8x512xi1>, vector<8x512xf32>
    %c1_i32_121 = arith.constant 1 : i32
    %310 = vector.broadcast %c1_i32_121 : i32 to vector<1x512xi32>
    %311 = arith.addi %2, %310 : vector<1x512xi32>
    %c0_i32_122 = arith.constant 0 : i32
    %312 = vector.broadcast %c0_i32_122 : i32 to vector<1x512xi32>
    %313 = arith.cmpi sge, %311, %312 : vector<1x512xi32>
    %c1_i32_123 = arith.constant 1 : i32
    %314 = vector.broadcast %c1_i32_123 : i32 to vector<1x512xi32>
    %315 = arith.addi %2, %314 : vector<1x512xi32>
    %c16_i32_124 = arith.constant 16 : i32
    %316 = vector.broadcast %c16_i32_124 : i32 to vector<1x512xi32>
    %317 = arith.cmpi slt, %315, %316 : vector<1x512xi32>
    %318 = arith.andi %313, %317 : vector<1x512xi1>
    %c511_i32_125 = arith.constant 511 : i32
    %319 = tpu.dynamic_rotate %216 by %c511_i32_125 dim 1 : vector<8x512xf32>, i32 -> vector<8x512xf32>
    %320 = arith.andi %280, %318 : vector<1x512xi1>
    %cst_126 = arith.constant 0.000000e+00 : f32
    %321 = vector.shape_cast %320 : vector<1x512xi1> to vector<1x512xi1>
    %322 = vector.broadcast %321 : vector<1x512xi1> to vector<8x512xi1>
    %323 = vector.broadcast %cst_126 : f32 to vector<8x512xf32>
    %324 = arith.select %322, %319, %323 : vector<8x512xi1>, vector<8x512xf32>
    %c1_i32_127 = arith.constant 1 : i32
    %325 = vector.broadcast %c1_i32_127 : i32 to vector<1x512xi32>
    %326 = arith.addi %1, %325 : vector<1x512xi32>
    %c0_i32_128 = arith.constant 0 : i32
    %327 = vector.broadcast %c0_i32_128 : i32 to vector<1x512xi32>
    %328 = arith.cmpi sge, %326, %327 : vector<1x512xi32>
    %c1_i32_129 = arith.constant 1 : i32
    %329 = vector.broadcast %c1_i32_129 : i32 to vector<1x512xi32>
    %330 = arith.addi %1, %329 : vector<1x512xi32>
    %c16_i32_130 = arith.constant 16 : i32
    %331 = vector.broadcast %c16_i32_130 : i32 to vector<1x512xi32>
    %332 = arith.cmpi slt, %330, %331 : vector<1x512xi32>
    %333 = arith.andi %328, %332 : vector<1x512xi1>
    %c-1_i32_131 = arith.constant -1 : i32
    %334 = vector.broadcast %c-1_i32_131 : i32 to vector<1x512xi32>
    %335 = arith.addi %2, %334 : vector<1x512xi32>
    %c0_i32_132 = arith.constant 0 : i32
    %336 = vector.broadcast %c0_i32_132 : i32 to vector<1x512xi32>
    %337 = arith.cmpi sge, %335, %336 : vector<1x512xi32>
    %c-1_i32_133 = arith.constant -1 : i32
    %338 = vector.broadcast %c-1_i32_133 : i32 to vector<1x512xi32>
    %339 = arith.addi %2, %338 : vector<1x512xi32>
    %c16_i32_134 = arith.constant 16 : i32
    %340 = vector.broadcast %c16_i32_134 : i32 to vector<1x512xi32>
    %341 = arith.cmpi slt, %339, %340 : vector<1x512xi32>
    %342 = arith.andi %337, %341 : vector<1x512xi1>
    %c497_i32_135 = arith.constant 497 : i32
    %343 = tpu.dynamic_rotate %216 by %c497_i32_135 dim 1 : vector<8x512xf32>, i32 -> vector<8x512xf32>
    %344 = arith.andi %333, %342 : vector<1x512xi1>
    %cst_136 = arith.constant 0.000000e+00 : f32
    %345 = vector.shape_cast %344 : vector<1x512xi1> to vector<1x512xi1>
    %346 = vector.broadcast %345 : vector<1x512xi1> to vector<8x512xi1>
    %347 = vector.broadcast %cst_136 : f32 to vector<8x512xf32>
    %348 = arith.select %346, %343, %347 : vector<8x512xi1>, vector<8x512xf32>
    %c0_i32_137 = arith.constant 0 : i32
    %349 = vector.broadcast %c0_i32_137 : i32 to vector<1x512xi32>
    %350 = arith.addi %2, %349 : vector<1x512xi32>
    %c0_i32_138 = arith.constant 0 : i32
    %351 = vector.broadcast %c0_i32_138 : i32 to vector<1x512xi32>
    %352 = arith.cmpi sge, %350, %351 : vector<1x512xi32>
    %c0_i32_139 = arith.constant 0 : i32
    %353 = vector.broadcast %c0_i32_139 : i32 to vector<1x512xi32>
    %354 = arith.addi %2, %353 : vector<1x512xi32>
    %c16_i32_140 = arith.constant 16 : i32
    %355 = vector.broadcast %c16_i32_140 : i32 to vector<1x512xi32>
    %356 = arith.cmpi slt, %354, %355 : vector<1x512xi32>
    %357 = arith.andi %352, %356 : vector<1x512xi1>
    %c496_i32_141 = arith.constant 496 : i32
    %358 = tpu.dynamic_rotate %216 by %c496_i32_141 dim 1 : vector<8x512xf32>, i32 -> vector<8x512xf32>
    %359 = arith.andi %333, %357 : vector<1x512xi1>
    %cst_142 = arith.constant 0.000000e+00 : f32
    %360 = vector.shape_cast %359 : vector<1x512xi1> to vector<1x512xi1>
    %361 = vector.broadcast %360 : vector<1x512xi1> to vector<8x512xi1>
    %362 = vector.broadcast %cst_142 : f32 to vector<8x512xf32>
    %363 = arith.select %361, %358, %362 : vector<8x512xi1>, vector<8x512xf32>
    %c1_i32_143 = arith.constant 1 : i32
    %364 = vector.broadcast %c1_i32_143 : i32 to vector<1x512xi32>
    %365 = arith.addi %2, %364 : vector<1x512xi32>
    %c0_i32_144 = arith.constant 0 : i32
    %366 = vector.broadcast %c0_i32_144 : i32 to vector<1x512xi32>
    %367 = arith.cmpi sge, %365, %366 : vector<1x512xi32>
    %c1_i32_145 = arith.constant 1 : i32
    %368 = vector.broadcast %c1_i32_145 : i32 to vector<1x512xi32>
    %369 = arith.addi %2, %368 : vector<1x512xi32>
    %c16_i32_146 = arith.constant 16 : i32
    %370 = vector.broadcast %c16_i32_146 : i32 to vector<1x512xi32>
    %371 = arith.cmpi slt, %369, %370 : vector<1x512xi32>
    %372 = arith.andi %367, %371 : vector<1x512xi1>
    %c495_i32_147 = arith.constant 495 : i32
    %373 = tpu.dynamic_rotate %216 by %c495_i32_147 dim 1 : vector<8x512xf32>, i32 -> vector<8x512xf32>
    %374 = arith.andi %333, %372 : vector<1x512xi1>
    %cst_148 = arith.constant 0.000000e+00 : f32
    %375 = vector.shape_cast %374 : vector<1x512xi1> to vector<1x512xi1>
    %376 = vector.broadcast %375 : vector<1x512xi1> to vector<8x512xi1>
    %377 = vector.broadcast %cst_148 : f32 to vector<8x512xf32>
    %378 = arith.select %376, %373, %377 : vector<8x512xi1>, vector<8x512xf32>
    %379 = tpu.concatenate %241, %256, %271, %295, %309, %324, %348, %363, %378 in 0 : vector<8x512xf32>, vector<8x512xf32>, vector<8x512xf32>, vector<8x512xf32>, vector<8x512xf32>, vector<8x512xf32>, vector<8x512xf32>, vector<8x512xf32>, vector<8x512xf32> -> vector<72x512xf32>
    %cst_149 = arith.constant dense<0.000000e+00> : vector<8x512xf32>
    %380 = tpu.matmul %217, %379, %cst_149 {dimension_numbers = #tpu.dot_dimension_numbers<[1], [0], [0], [1], [0, 0, 1, 1], [], []>} : vector<8x72xf32>, vector<72x512xf32>, vector<8x512xf32> -> vector<8x512xf32>
    %381 = arith.addf %380, %0 : vector<8x512xf32>
    %c0_150 = arith.constant 0 : index
    %c0_151 = arith.constant 0 : index
    %382 = vector.load %arg9[%c0_150, %c0_151] : memref<8x512xf32, #tpu.memory_space<vmem>>, vector<8x512xf32>
    tpu.vector_store %arg9[%c0_150, %c0_151], %381 {strides = array<i32>} : memref<8x512xf32, #tpu.memory_space<vmem>>, vector<8x512xf32>,
    return
  }
}

</mosaic_0001>

<llo_original>
// kernel: tpu_custom_call.1
$region0: #{tpu_custom_call.1}
  #allocation0 [shape = 'u32[]', space=smem, size = 0x4, offset = 0x4, fixed_abs, tag = 'smem constant byte address 0x4 - core index']
  #allocation1 [shape = 'u32[144,128]{1,0:T(1,128)}', space=vmem, size = 0x12000, scoped, tag = 'internal scratch']
  %s0 = inlined_call_operand.vmem [shape: f32[8,512], index: 0, kind: input, shape index: {}]
  %s1 = inlined_call_operand.hbm [shape: s32[1,512], index: 1, kind: input, shape index: {}]
  %s2 = inlined_call_operand.hbm [shape: s32[1,512], index: 2, kind: input, shape index: {}]
  %s3 = inlined_call_operand.vmem [shape: f32[8,72], index: 3, kind: input, shape index: {}]
  %s4 = inlined_call_operand.hbm [shape: f32[8,72], index: 4, kind: input, shape index: {}]
  %s5 = inlined_call_operand.vmem [shape: f32[8,1], index: 5, kind: input, shape index: {}]
  %s6 = inlined_call_operand.vmem [shape: f32[8,1], index: 6, kind: input, shape index: {}]
  %s7 = inlined_call_operand.vmem [shape: f32[8,1], index: 7, kind: input, shape index: {}]
  %s8 = inlined_call_operand.vmem [shape: f32[8,1], index: 8, kind: input, shape index: {}]
  %s9 = inlined_call_operand.hbm [shape: f32[8,512], index: 9, kind: output, shape index: {}]
  %s10 = sld [smem:[#allocation0]]
  $region58: #{tpu_custom_call.1} parent=0
    _
  %s12 = ssub.s32 1, %s10
  %s13 = scalar_select 0, %s12, %s10
  $region1: #{tpu_custom_call.1} parent=0
    #allocation2 [shape = 'u8[2048]{0}', space=vmem, size = 0x800, scoped, tag = 'input window, operand 1, single buffered']
    #allocation3 [shape = 's32[1]{0}', space=sflag, size = 0x4, scoped, tag = 'scoped memory for tpu_custom_call.1']
    #allocation4 [shape = 's32[1]{0}', space=sflag, size = 0x4, scoped, tag = 'scoped memory for tpu_custom_call.1']
    #allocation5 [shape = 'u8[2048]{0}', space=vmem, size = 0x800, scoped, tag = 'input window, operand 2, single buffered']
    #allocation6 [shape = 's32[1]{0}', space=sflag, size = 0x4, scoped, tag = 'scoped memory for tpu_custom_call.1']
    #allocation7 [shape = 'u8[4096]{0}', space=vmem, size = 0x1000, scoped, tag = 'input window, operand 4, single buffered']
    #allocation8 [shape = 'u8[16384]{0}', space=vmem, size = 0x4000, scoped, tag = 'output window, operand 0, single buffered']
    %14 = vsyncpa [#allocation3], 0
    %15 = vsyncpa [#allocation6], 0
    %16 = vsyncpa [#allocation4], 0
    // Predicated region
    $region2: #{tpu_custom_call.1} parent=1 // pred_check
      _
    $region3: #{tpu_custom_call.1} parent=1 // pred_check_branch
      %18 = sbr.rel (0) target = $region5
    $region4: #{tpu_custom_call.1} parent=1 // pred_region
      _
    $region5: #{tpu_custom_call.1} parent=1 // pred_fallthru
      _
    // Predicated region
    $region6: #{tpu_custom_call.1} parent=1 // pred_check
      _
    $region7: #{tpu_custom_call.1} parent=1 // pred_check_branch
      %20 = sbr.rel (0) target = $region9
    $region8: #{tpu_custom_call.1} parent=1 // pred_region
      %s22 = ssub.s32 64, 64
      %23 = vsyncadd [#allocation3], %s22
      %s25 = sshll.u32 [#allocation2], 4
      %s26 = int_to_ptr.vmem [resolvable:$true] %s25
      %28 = dma.hbm_to_vmem [thread:$0]  %s1, 64, %s26, [#allocation3]
    $region9: #{tpu_custom_call.1} parent=1 // pred_fallthru
      _
    // Predicated region
    $region10: #{tpu_custom_call.1} parent=1 // pred_check
      _
    $region11: #{tpu_custom_call.1} parent=1 // pred_check_branch
      %30 = sbr.rel (0) target = $region13
    $region12: #{tpu_custom_call.1} parent=1 // pred_region
      %s32 = ssub.s32 64, 64
      %33 = vsyncadd [#allocation6], %s32
      %s35 = sshll.u32 [#allocation5], 4
      %s36 = int_to_ptr.vmem [resolvable:$true] %s35
      %38 = dma.hbm_to_vmem [thread:$0]  %s2, 64, %s36, [#allocation6]
    $region13: #{tpu_custom_call.1} parent=1 // pred_fallthru
      _
    // Predicated region
    $region14: #{tpu_custom_call.1} parent=1 // pred_check
      _
    $region15: #{tpu_custom_call.1} parent=1 // pred_check_branch
      %40 = sbr.rel (0) target = $region17
    $region16: #{tpu_custom_call.1} parent=1 // pred_region
      _
    $region17: #{tpu_custom_call.1} parent=1 // pred_fallthru
      _
    // Predicated region
    $region18: #{tpu_custom_call.1} parent=1 // pred_check
      _
    $region19: #{tpu_custom_call.1} parent=1 // pred_check_branch
      %42 = sbr.rel (0) target = $region21
    $region20: #{tpu_custom_call.1} parent=1 // pred_region
      %s44 = ssub.s32 128, 128
      %45 = vsyncadd [#allocation6], %s44
      %s47 = sshll.u32 [#allocation7], 4
      %s48 = int_to_ptr.vmem [resolvable:$true] %s47
      %50 = dma.hbm_to_vmem [thread:$0]  %s4, 128, %s48, [#allocation6]
    $region21: #{tpu_custom_call.1} parent=1 // pred_fallthru
      _
    // Predicated region
    $region22: #{tpu_custom_call.1} parent=1 // pred_check
      _
    $region23: #{tpu_custom_call.1} parent=1 // pred_check_branch
      %52 = sbr.rel (0) target = $region25
    $region24: #{tpu_custom_call.1} parent=1 // pred_region
      _
    $region25: #{tpu_custom_call.1} parent=1 // pred_fallthru
      _
    // Predicated region
    $region26: #{tpu_custom_call.1} parent=1 // pred_check
      _
    $region27: #{tpu_custom_call.1} parent=1 // pred_check_branch
      %54 = sbr.rel (0) target = $region29
    $region28: #{tpu_custom_call.1} parent=1 // pred_region
      _
    $region29: #{tpu_custom_call.1} parent=1 // pred_fallthru
      _
    // Predicated region
    $region30: #{tpu_custom_call.1} parent=1 // pred_check
      _
    $region31: #{tpu_custom_call.1} parent=1 // pred_check_branch
      %56 = sbr.rel (0) target = $region33
    $region32: #{tpu_custom_call.1} parent=1 // pred_region
      _
    $region33: #{tpu_custom_call.1} parent=1 // pred_fallthru
      _
    // Predicated region
    $region34: #{tpu_custom_call.1} parent=1 // pred_check
      _
    $region35: #{tpu_custom_call.1} parent=1 // pred_check_branch
      %58 = sbr.rel (0) target = $region37
    $region36: #{tpu_custom_call.1} parent=1 // pred_region
      _
    $region37: #{tpu_custom_call.1} parent=1 // pred_fallthru
      _
    // Predicated region
    $region38: #{tpu_custom_call.1} parent=1 // pred_check
      _
    $region39: #{tpu_custom_call.1} parent=1 // pred_check_branch
      %60 = sbr.rel (0) target = $region41
    $region40: #{tpu_custom_call.1} parent=1 // pred_region
      %61 = dma.done [#allocation3], 64
    $region41: #{tpu_custom_call.1} parent=1 // pred_fallthru
      _
    // Predicated region
    $region42: #{tpu_custom_call.1} parent=1 // pred_check
      _
    $region43: #{tpu_custom_call.1} parent=1 // pred_check_branch
      %63 = sbr.rel (0) target = $region45
    $region44: #{tpu_custom_call.1} parent=1 // pred_region
      %64 = dma.done [#allocation6], 64
    $region45: #{tpu_custom_call.1} parent=1 // pred_fallthru
      _
    // Predicated region
    $region46: #{tpu_custom_call.1} parent=1 // pred_check
      _
    $region47: #{tpu_custom_call.1} parent=1 // pred_check_branch
      %66 = sbr.rel (0) target = $region49
    $region48: #{tpu_custom_call.1} parent=1 // pred_region
      %67 = dma.done [#allocation6], 128
    $region49: #{tpu_custom_call.1} parent=1 // pred_fallthru
      _
    %v68 = vld [vmem:[%s0] sm:$0xff]
    %v69 = vld [vmem:[%s0 + $0x8] sm:$0xff]
    %v70 = vld [vmem:[%s0 + $0x10] sm:$0xff]
    %v71 = vld [vmem:[%s0 + $0x18] sm:$0xff]
    %v72 = vld [vmem:[#allocation2] sm:$0xf]
    %v73 = vld [vmem:[#allocation5] sm:$0xf]
    %v74 = vld [vmem:[%s5] sm:$0xff]
    %v75 = vld [vmem:[%s6] sm:$0xff]
    %v76 = vadd.f32 %v68, %v69
    %v77 = vadd.f32 %v76, %v70
    %v78 = vadd.f32 %v77, %v71
    %79 = vadd.xlane.f32.xlu0 %v78
    %v80 = vpop.xlane.xlu0 %79
    %v81 = vmul.f32 %v80, 0.001953125
    %v82 = vmul.f32 %v68, %v68
    %v83 = vmul.f32 %v69, %v69
    %v84 = vmul.f32 %v70, %v70
    %v85 = vmul.f32 %v71, %v71
    %v86 = vadd.f32 %v82, %v83
    %v87 = vadd.f32 %v86, %v84
    %v88 = vadd.f32 %v87, %v85
    %89 = vadd.xlane.f32.xlu0 %v88
    %v90 = vpop.xlane.xlu0 %89
    %v91 = vmul.f32 %v90, 0.001953125
    %v92 = vmul.f32 %v81, %v81
    %v93 = vsub.f32 %v91, %v92
    %v94 = vadd.f32 %v93, 1e-05
    %v95 = vrsqrt.pop %v94
    %v96 = vmul.f32 %v74, %v95
    %v97 = vmul.f32 %v81, %v96
    %v98 = vsub.f32 %v75, %v97
    %100 = vset.pattern.permute.xlu0 0
    %101 = vperm.xlu0 %100, %v96
    %v102 = vpop.permute.xlu0 %101
    %v104 = vmul.f32 %v68, %v102
    %v105 = vmul.f32 %v69, %v102
    %v106 = vmul.f32 %v70, %v102
    %v107 = vmul.f32 %v71, %v102
    %109 = vset.pattern.permute.xlu0 0
    %110 = vperm.xlu0 %109, %v98
    %v111 = vpop.permute.xlu0 %110
    %v113 = vadd.f32 %v104, %v111
    %v114 = vadd.f32 %v105, %v111
    %v115 = vadd.f32 %v106, %v111
    %v116 = vadd.f32 %v107, %v111
    %v117 = vmax.f32 %v113, 0.0
    %v118 = vmax.f32 %v114, 0.0
    %v119 = vmax.f32 %v115, 0.0
    %v120 = vmax.f32 %v116, 0.0
    %v121 = vld [vmem:[%s3] sm:$0xff]
    %v122 = vadd.s32 %v72, 4294967295
    %vm123 = vcmp.ge.s32.totalorder %v122, 0
    %vm124 = vcmp.lt.s32.totalorder %v122, 16
    %vm125 = vmand %vm123, %vm124
    %v126 = vadd.s32 %v73, 4294967295
    %vm127 = vcmp.ge.s32.totalorder %v126, 0
    %vm128 = vcmp.lt.s32.totalorder %v126, 16
    %vm129 = vmand %vm127, %vm128
    %130 = vrot.lane.b32.xlu0 %v117, 17
    %v131 = vpop.permute.xlu0 %130
    %132 = vrot.lane.b32.xlu0 %v118, 17
    %v133 = vpop.permute.xlu0 %132
    %134 = vrot.lane.b32.xlu0 %v119, 17
    %v135 = vpop.permute.xlu0 %134
    %136 = vrot.lane.b32.xlu0 %v120, 17
    %v137 = vpop.permute.xlu0 %136
    %v138 = vlaneseq
    %v139 = vand.u32 %v138, 127
    %vm140 = vcmp.lt.s32.totalorder %v139, 17
    %v141 = vsel %vm140, %v135, %v137
    %v142 = vsel %vm140, %v133, %v135
    %v143 = vsel %vm140, %v131, %v133
    %v144 = vsel %vm140, %v137, %v131
    %vm145 = vmand %vm125, %vm129
    %v146 = vsel %vm145, 1, 0
    %v147 = vlaneseq
    %v148 = vshrl.u32 %v147, 7
    %v149 = vsub.s32 0, %v148
    %v150 = vrot.slane %v146, %v149
    %v151 = vlaneseq
    %v152 = vshrl.u32 %v151, 7
    %v153 = vsub.s32 1, %v152
    %v154 = vrot.slane %v146, %v153
    %v155 = vlaneseq
    %v156 = vshrl.u32 %v155, 7
    %v157 = vsub.s32 2, %v156
    %v158 = vrot.slane %v146, %v157
    %v159 = vlaneseq
    %v160 = vshrl.u32 %v159, 7
    %v161 = vsub.s32 3, %v160
    %v162 = vrot.slane %v146, %v161
    %vm163 = vcmp.eq.s32.totalorder %v150, 1
    %vm164 = vcmp.eq.s32.totalorder %v154, 1
    %vm165 = vcmp.eq.s32.totalorder %v158, 1
    %vm166 = vcmp.eq.s32.totalorder %v162, 1
    %v167 = vsel %vm163, %v144, 0.0
    %v168 = vsel %vm164, %v143, 0.0
    %v169 = vsel %vm165, %v142, 0.0
    %v170 = vsel %vm166, %v141, 0.0
    %vm171 = vcmp.ge.s32.totalorder %v73, 0
    %vm172 = vcmp.lt.s32.totalorder %v73, 16
    %vm173 = vmand %vm171, %vm172
    %174 = vrot.lane.b32.xlu0 %v117, 16
    %v175 = vpop.permute.xlu0 %174
    %176 = vrot.lane.b32.xlu0 %v118, 16
    %v177 = vpop.permute.xlu0 %176
    %178 = vrot.lane.b32.xlu0 %v119, 16
    %v179 = vpop.permute.xlu0 %178
    %180 = vrot.lane.b32.xlu0 %v120, 16
    %v181 = vpop.permute.xlu0 %180
    %vm182 = vcmp.lt.s32.totalorder %v139, 16
    %v183 = vsel %vm182, %v179, %v181
    %v184 = vsel %vm182, %v177, %v179
    %v185 = vsel %vm182, %v175, %v177
    %v186 = vsel %vm182, %v181, %v175
    %vm187 = vmand %vm125, %vm173
    %v188 = vsel %vm187, 1, 0
    %v189 = vlaneseq
    %v190 = vshrl.u32 %v189, 7
    %v191 = vsub.s32 0, %v190
    %v192 = vrot.slane %v188, %v191
    %v193 = vlaneseq
    %v194 = vshrl.u32 %v193, 7
    %v195 = vsub.s32 1, %v194
    %v196 = vrot.slane %v188, %v195
    %v197 = vlaneseq
    %v198 = vshrl.u32 %v197, 7
    %v199 = vsub.s32 2, %v198
    %v200 = vrot.slane %v188, %v199
    %v201 = vlaneseq
    %v202 = vshrl.u32 %v201, 7
    %v203 = vsub.s32 3, %v202
    %v204 = vrot.slane %v188, %v203
    %vm205 = vcmp.eq.s32.totalorder %v192, 1
    %vm206 = vcmp.eq.s32.totalorder %v196, 1
    %vm207 = vcmp.eq.s32.totalorder %v200, 1
    %vm208 = vcmp.eq.s32.totalorder %v204, 1
    %v209 = vsel %vm205, %v186, 0.0
    %v210 = vsel %vm206, %v185, 0.0
    %v211 = vsel %vm207, %v184, 0.0
    %v212 = vsel %vm208, %v183, 0.0
    %v213 = vadd.s32 %v73, 1
    %vm214 = vcmp.ge.s32.totalorder %v213, 0
    %vm215 = vcmp.lt.s32.totalorder %v213, 16
    %vm216 = vmand %vm214, %vm215
    %217 = vrot.lane.b32.xlu0 %v117, 15
    %v218 = vpop.permute.xlu0 %217
    %219 = vrot.lane.b32.xlu0 %v118, 15
    %v220 = vpop.permute.xlu0 %219
    %221 = vrot.lane.b32.xlu0 %v119, 15
    %v222 = vpop.permute.xlu0 %221
    %223 = vrot.lane.b32.xlu0 %v120, 15
    %v224 = vpop.permute.xlu0 %223
    %vm225 = vcmp.lt.s32.totalorder %v139, 15
    %v226 = vsel %vm225, %v222, %v224
    %v227 = vsel %vm225, %v220, %v222
    %v228 = vsel %vm225, %v218, %v220
    %v229 = vsel %vm225, %v224, %v218
    %vm230 = vmand %vm125, %vm216
    %v231 = vsel %vm230, 1, 0
    %v232 = vlaneseq
    %v233 = vshrl.u32 %v232, 7
    %v234 = vsub.s32 0, %v233
    %v235 = vrot.slane %v231, %v234
    %v236 = vlaneseq
    %v237 = vshrl.u32 %v236, 7
    %v238 = vsub.s32 1, %v237
    %v239 = vrot.slane %v231, %v238
    %v240 = vlaneseq
    %v241 = vshrl.u32 %v240, 7
    %v242 = vsub.s32 2, %v241
    %v243 = vrot.slane %v231, %v242
    %v244 = vlaneseq
    %v245 = vshrl.u32 %v244, 7
    %v246 = vsub.s32 3, %v245
    %v247 = vrot.slane %v231, %v246
    %vm248 = vcmp.eq.s32.totalorder %v235, 1
    %vm249 = vcmp.eq.s32.totalorder %v239, 1
    %vm250 = vcmp.eq.s32.totalorder %v243, 1
    %vm251 = vcmp.eq.s32.totalorder %v247, 1
    %v252 = vsel %vm248, %v229, 0.0
    %v253 = vsel %vm249, %v228, 0.0
    %v254 = vsel %vm250, %v227, 0.0
    %v255 = vsel %vm251, %v226, 0.0
    %vm256 = vcmp.ge.s32.totalorder %v72, 0
    %vm257 = vcmp.lt.s32.totalorder %v72, 16
    %vm258 = vmand %vm256, %vm257
    %259 = vrot.lane.b32.xlu0 %v117, 1
    %v260 = vpop.permute.xlu0 %259
    %261 = vrot.lane.b32.xlu0 %v118, 1
    %v262 = vpop.permute.xlu0 %261
    %263 = vrot.lane.b32.xlu0 %v119, 1
    %v264 = vpop.permute.xlu0 %263
    %265 = vrot.lane.b32.xlu0 %v120, 1
    %v266 = vpop.permute.xlu0 %265
    %vm267 = vcmp.lt.s32.totalorder %v139, 1
    %v268 = vsel %vm267, %v264, %v266
    %v269 = vsel %vm267, %v262, %v264
    %v270 = vsel %vm267, %v260, %v262
    %v271 = vsel %vm267, %v266, %v260
    %vm272 = vmand %vm258, %vm129
    %v273 = vsel %vm272, 1, 0
    %v274 = vlaneseq
    %v275 = vshrl.u32 %v274, 7
    %v276 = vsub.s32 0, %v275
    %v277 = vrot.slane %v273, %v276
    %v278 = vlaneseq
    %v279 = vshrl.u32 %v278, 7
    %v280 = vsub.s32 1, %v279
    %v281 = vrot.slane %v273, %v280
    %v282 = vlaneseq
    %v283 = vshrl.u32 %v282, 7
    %v284 = vsub.s32 2, %v283
    %v285 = vrot.slane %v273, %v284
    %v286 = vlaneseq
    %v287 = vshrl.u32 %v286, 7
    %v288 = vsub.s32 3, %v287
    %v289 = vrot.slane %v273, %v288
    %vm290 = vcmp.eq.s32.totalorder %v277, 1
    %vm291 = vcmp.eq.s32.totalorder %v281, 1
    %vm292 = vcmp.eq.s32.totalorder %v285, 1
    %vm293 = vcmp.eq.s32.totalorder %v289, 1
    %v294 = vsel %vm290, %v271, 0.0
    %v295 = vsel %vm291, %v270, 0.0
    %v296 = vsel %vm292, %v269, 0.0
    %v297 = vsel %vm293, %v268, 0.0
    %vm298 = vmand %vm258, %vm173
    %v299 = vsel %vm298, 1, 0
    %v300 = vlaneseq
    %v301 = vshrl.u32 %v300, 7
    %v302 = vsub.s32 0, %v301
    %v303 = vrot.slane %v299, %v302
    %v304 = vlaneseq
    %v305 = vshrl.u32 %v304, 7
    %v306 = vsub.s32 1, %v305
    %v307 = vrot.slane %v299, %v306
    %v308 = vlaneseq
    %v309 = vshrl.u32 %v308, 7
    %v310 = vsub.s32 2, %v309
    %v311 = vrot.slane %v299, %v310
    %v312 = vlaneseq
    %v313 = vshrl.u32 %v312, 7
    %v314 = vsub.s32 3, %v313
    %v315 = vrot.slane %v299, %v314
    %vm316 = vcmp.eq.s32.totalorder %v303, 1
    %vm317 = vcmp.eq.s32.totalorder %v307, 1
    %vm318 = vcmp.eq.s32.totalorder %v311, 1
    %vm319 = vcmp.eq.s32.totalorder %v315, 1
    %v320 = vsel %vm316, %v117, 0.0
    %v321 = vsel %vm317, %v118, 0.0
    %v322 = vsel %vm318, %v119, 0.0
    %v323 = vsel %vm319, %v120, 0.0
    %324 = vrot.lane.b32.xlu0 %v117, 127
    %v325 = vpop.permute.xlu0 %324
    %326 = vrot.lane.b32.xlu0 %v118, 127
    %v327 = vpop.permute.xlu0 %326
    %328 = vrot.lane.b32.xlu0 %v119, 127
    %v329 = vpop.permute.xlu0 %328
    %330 = vrot.lane.b32.xlu0 %v120, 127
    %v331 = vpop.permute.xlu0 %330
    %vm332 = vcmp.lt.s32.totalorder %v139, 127
    %v333 = vsel %vm332, %v329, %v331
    %v334 = vsel %vm332, %v327, %v329
    %v335 = vsel %vm332, %v325, %v327
    %v336 = vsel %vm332, %v331, %v325
    %vm337 = vmand %vm258, %vm216
    %v338 = vsel %vm337, 1, 0
    %v339 = vlaneseq
    %v340 = vshrl.u32 %v339, 7
    %v341 = vsub.s32 0, %v340
    %v342 = vrot.slane %v338, %v341
    %v343 = vlaneseq
    %v344 = vshrl.u32 %v343, 7
    %v345 = vsub.s32 1, %v344
    %v346 = vrot.slane %v338, %v345
    %v347 = vlaneseq
    %v348 = vshrl.u32 %v347, 7
    %v349 = vsub.s32 2, %v348
    %v350 = vrot.slane %v338, %v349
    %v351 = vlaneseq
    %v352 = vshrl.u32 %v351, 7
    %v353 = vsub.s32 3, %v352
    %v354 = vrot.slane %v338, %v353
    %vm355 = vcmp.eq.s32.totalorder %v342, 1
    %vm356 = vcmp.eq.s32.totalorder %v346, 1
    %vm357 = vcmp.eq.s32.totalorder %v350, 1
    %vm358 = vcmp.eq.s32.totalorder %v354, 1
    %v359 = vsel %vm355, %v335, 0.0
    %v360 = vsel %vm356, %v334, 0.0
    %v361 = vsel %vm357, %v333, 0.0
    %v362 = vsel %vm358, %v336, 0.0
    %v363 = vadd.s32 %v72, 1
    %vm364 = vcmp.ge.s32.totalorder %v363, 0
    %vm365 = vcmp.lt.s32.totalorder %v363, 16
    %vm366 = vmand %vm364, %vm365
    %367 = vrot.lane.b32.xlu0 %v117, 113
    %v368 = vpop.permute.xlu0 %367
    %369 = vrot.lane.b32.xlu0 %v118, 113
    %v370 = vpop.permute.xlu0 %369
    %371 = vrot.lane.b32.xlu0 %v119, 113
    %v372 = vpop.permute.xlu0 %371
    %373 = vrot.lane.b32.xlu0 %v120, 113
    %v374 = vpop.permute.xlu0 %373
    %vm375 = vcmp.lt.s32.totalorder %v139, 113
    %v376 = vsel %vm375, %v372, %v374
    %v377 = vsel %vm375, %v370, %v372
    %v378 = vsel %vm375, %v368, %v370
    %v379 = vsel %vm375, %v374, %v368
    %vm380 = vmand %vm366, %vm129
    %v381 = vsel %vm380, 1, 0
    %v382 = vlaneseq
    %v383 = vshrl.u32 %v382, 7
    %v384 = vsub.s32 0, %v383
    %v385 = vrot.slane %v381, %v384
    %v386 = vlaneseq
    %v387 = vshrl.u32 %v386, 7
    %v388 = vsub.s32 1, %v387
    %v389 = vrot.slane %v381, %v388
    %v390 = vlaneseq
    %v391 = vshrl.u32 %v390, 7
    %v392 = vsub.s32 2, %v391
    %v393 = vrot.slane %v381, %v392
    %v394 = vlaneseq
    %v395 = vshrl.u32 %v394, 7
    %v396 = vsub.s32 3, %v395
    %v397 = vrot.slane %v381, %v396
    %vm398 = vcmp.eq.s32.totalorder %v385, 1
    %vm399 = vcmp.eq.s32.totalorder %v389, 1
    %vm400 = vcmp.eq.s32.totalorder %v393, 1
    %vm401 = vcmp.eq.s32.totalorder %v397, 1
    %v402 = vsel %vm398, %v378, 0.0
    %v403 = vsel %vm399, %v377, 0.0
    %v404 = vsel %vm400, %v376, 0.0
    %v405 = vsel %vm401, %v379, 0.0
    %406 = vrot.lane.b32.xlu0 %v117, 112
    %v407 = vpop.permute.xlu0 %406
    %408 = vrot.lane.b32.xlu0 %v118, 112
    %v409 = vpop.permute.xlu0 %408
    %410 = vrot.lane.b32.xlu0 %v119, 112
    %v411 = vpop.permute.xlu0 %410
    %412 = vrot.lane.b32.xlu0 %v120, 112
    %v413 = vpop.permute.xlu0 %412
    %vm414 = vcmp.lt.s32.totalorder %v139, 112
    %v415 = vsel %vm414, %v411, %v413
    %v416 = vsel %vm414, %v409, %v411
    %v417 = vsel %vm414, %v407, %v409
    %v418 = vsel %vm414, %v413, %v407
    %vm419 = vmand %vm366, %vm173
    %v420 = vsel %vm419, 1, 0
    %v421 = vlaneseq
    %v422 = vshrl.u32 %v421, 7
    %v423 = vsub.s32 0, %v422
    %v424 = vrot.slane %v420, %v423
    %v425 = vlaneseq
    %v426 = vshrl.u32 %v425, 7
    %v427 = vsub.s32 1, %v426
    %v428 = vrot.slane %v420, %v427
    %v429 = vlaneseq
    %v430 = vshrl.u32 %v429, 7
    %v431 = vsub.s32 2, %v430
    %v432 = vrot.slane %v420, %v431
    %v433 = vlaneseq
    %v434 = vshrl.u32 %v433, 7
    %v435 = vsub.s32 3, %v434
    %v436 = vrot.slane %v420, %v435
    %vm437 = vcmp.eq.s32.totalorder %v424, 1
    %vm438 = vcmp.eq.s32.totalorder %v428, 1
    %vm439 = vcmp.eq.s32.totalorder %v432, 1
    %vm440 = vcmp.eq.s32.totalorder %v436, 1
    %v441 = vsel %vm437, %v417, 0.0
    %v442 = vsel %vm438, %v416, 0.0
    %v443 = vsel %vm439, %v415, 0.0
    %v444 = vsel %vm440, %v418, 0.0
    %445 = vrot.lane.b32.xlu0 %v117, 111
    %v446 = vpop.permute.xlu0 %445
    %447 = vrot.lane.b32.xlu0 %v118, 111
    %v448 = vpop.permute.xlu0 %447
    %449 = vrot.lane.b32.xlu0 %v119, 111
    %v450 = vpop.permute.xlu0 %449
    %451 = vrot.lane.b32.xlu0 %v120, 111
    %v452 = vpop.permute.xlu0 %451
    %vm453 = vcmp.lt.s32.totalorder %v139, 111
    %v454 = vsel %vm453, %v450, %v452
    %v455 = vsel %vm453, %v448, %v450
    %v456 = vsel %vm453, %v446, %v448
    %v457 = vsel %vm453, %v452, %v446
    %vm458 = vmand %vm366, %vm216
    %v459 = vsel %vm458, 1, 0
    %v460 = vlaneseq
    %v461 = vshrl.u32 %v460, 7
    %v462 = vsub.s32 0, %v461
    %v463 = vrot.slane %v459, %v462
    %v464 = vlaneseq
    %v465 = vshrl.u32 %v464, 7
    %v466 = vsub.s32 1, %v465
    %v467 = vrot.slane %v459, %v466
    %v468 = vlaneseq
    %v469 = vshrl.u32 %v468, 7
    %v470 = vsub.s32 2, %v469
    %v471 = vrot.slane %v459, %v470
    %v472 = vlaneseq
    %v473 = vshrl.u32 %v472, 7
    %v474 = vsub.s32 3, %v473
    %v475 = vrot.slane %v459, %v474
    %vm476 = vcmp.eq.s32.totalorder %v463, 1
    %vm477 = vcmp.eq.s32.totalorder %v467, 1
    %vm478 = vcmp.eq.s32.totalorder %v471, 1
    %vm479 = vcmp.eq.s32.totalorder %v475, 1
    %v480 = vsel %vm476, %v456, 0.0
    %v481 = vsel %vm477, %v455, 0.0
    %v482 = vsel %vm478, %v454, 0.0
    %v483 = vsel %vm479, %v457, 0.0
    %vm484 = vcmask 588800
    %v486 = vsel %vm484, %v121, 0
    %488 = vmatprep.subr.mxu0 0.0
    %489 = vmatpush1.msra.mxu0 0.0
    %490 = vmatprep.subr.mxu0 0.0
    %491 = vmatpush1.msra.mxu0 0.0
    %492 = vmatprep.subr.mxu0 0.0
    %493 = vmatpush1.msra.mxu0 0.0
    %494 = vmatprep.subr.mxu0 0.0
    %495 = vmatpush1.msra.mxu0 0.0
    %496 = vmatprep.subr.mxu0 0.0
    %497 = vmatpush1.msra.mxu0 0.0
    %498 = vmatprep.subr.mxu0 0.0
    %499 = vmatpush1.msra.mxu0 0.0
    %500 = vmatprep.subr.mxu0 0.0
    %501 = vmatpush1.msra.mxu0 0.0
    %502 = vmatprep.subr.mxu0 %v481
    %503 = vmatpush1.msra.mxu0 %v480
    %504 = vmatprep.subr.mxu0 %v442
    %505 = vmatpush1.msra.mxu0 %v441
    %506 = vmatprep.subr.mxu0 %v403
    %507 = vmatpush1.msra.mxu0 %v402
    %508 = vmatprep.subr.mxu0 %v360
    %509 = vmatpush1.msra.mxu0 %v359
    %510 = vmatprep.subr.mxu0 %v321
    %511 = vmatpush1.msra.mxu0 %v320
    %512 = vmatprep.subr.mxu0 %v295
    %513 = vmatpush1.msra.mxu0 %v294
    %514 = vmatprep.subr.mxu0 %v253
    %515 = vmatpush1.msra.mxu0 %v252
    %516 = vmatprep.subr.mxu0 %v210
    %517 = vmatpush1.msra.mxu0 %v209
    %518 = vmatprep.subr.mxu0 %v168
    %519 = vmatpush1.msra.mxu0 %v167
    %520 = vmatprep.subr.mxu0 0.0
    %521 = vmatpush2.msra.mxu0 0.0
    %522 = vmatprep.subr.mxu0 0.0
    %523 = vmatpush2.msra.mxu0 0.0
    %524 = vmatprep.subr.mxu0 0.0
    %525 = vmatpush2.msra.mxu0 0.0
    %526 = vmatprep.subr.mxu0 0.0
    %527 = vmatpush2.msra.mxu0 0.0
    %528 = vmatprep.subr.mxu0 0.0
    %529 = vmatpush2.msra.mxu0 0.0
    %530 = vmatprep.subr.mxu0 0.0
    %531 = vmatpush2.msra.mxu0 0.0
    %532 = vmatprep.subr.mxu0 0.0
    %533 = vmatpush2.msra.mxu0 0.0
    %534 = vmatprep.subr.mxu0 0.0
    %535 = vmatpush2.msra.mxu0 0.0
    %536 = vmatprep.subr.mxu0 0.0
    %537 = vmatpush2.msra.mxu0 0.0
    %538 = vmatprep.subr.mxu0 0.0
    %539 = vmatpush2.msra.mxu0 0.0
    %540 = vmatprep.subr.mxu0 0.0
    %541 = vmatpush2.msra.mxu0 0.0
    %542 = vmatprep.subr.mxu0 0.0
    %543 = vmatpush2.msra.mxu0 0.0
    %544 = vmatprep.subr.mxu0 0.0
    %545 = vmatpush2.msra.mxu0 0.0
    %546 = vmatprep.subr.mxu0 0.0
    %547 = vmatpush2.msra.mxu0 0.0
    %548 = vmatprep.subr.mxu0 0.0
    %549 = vmatpush2.msra.mxu0 0.0
    %550 = vmatprep.subr.mxu0 0.0
    %551 = vmatpush2.msra.mxu0 0.0
    %552 = vmatprep.mubr.f32.mxu0 0.0
    %553 = vmatmul.mubr.f32.gmra.mxu0 %v486
    %v554 = vpop.f32.mrf.mxu0
    %v555 = vadd.f32 0.0, %v554
    %v556 = vpop.f32.mrf.mxu0
    %v557 = vadd.f32 0.0, %v556
    %558 = vdwg.mxu0
    %559 = vmatprep.subr.mxu0 0.0
    %560 = vmatpush1.msra.mxu0 0.0
    %561 = vmatprep.subr.mxu0 0.0
    %562 = vmatpush1.msra.mxu0 0.0
    %563 = vmatprep.subr.mxu0 0.0
    %564 = vmatpush1.msra.mxu0 0.0
    %565 = vmatprep.subr.mxu0 0.0
    %566 = vmatpush1.msra.mxu0 0.0
    %567 = vmatprep.subr.mxu0 0.0
    %568 = vmatpush1.msra.mxu0 0.0
    %569 = vmatprep.subr.mxu0 0.0
    %570 = vmatpush1.msra.mxu0 0.0
    %571 = vmatprep.subr.mxu0 0.0
    %572 = vmatpush1.msra.mxu0 0.0
    %573 = vmatprep.subr.mxu0 %v483
    %574 = vmatpush1.msra.mxu0 %v482
    %575 = vmatprep.subr.mxu0 %v444
    %576 = vmatpush1.msra.mxu0 %v443
    %577 = vmatprep.subr.mxu0 %v405
    %578 = vmatpush1.msra.mxu0 %v404
    %579 = vmatprep.subr.mxu0 %v362
    %580 = vmatpush1.msra.mxu0 %v361
    %581 = vmatprep.subr.mxu0 %v323
    %582 = vmatpush1.msra.mxu0 %v322
    %583 = vmatprep.subr.mxu0 %v297
    %584 = vmatpush1.msra.mxu0 %v296
    %585 = vmatprep.subr.mxu0 %v255
    %586 = vmatpush1.msra.mxu0 %v254
    %587 = vmatprep.subr.mxu0 %v212
    %588 = vmatpush1.msra.mxu0 %v211
    %589 = vmatprep.subr.mxu0 %v170
    %590 = vmatpush1.msra.mxu0 %v169
    %591 = vmatprep.subr.mxu0 0.0
    %592 = vmatpush2.msra.mxu0 0.0
    %593 = vmatprep.subr.mxu0 0.0
    %594 = vmatpush2.msra.mxu0 0.0
    %595 = vmatprep.subr.mxu0 0.0
    %596 = vmatpush2.msra.mxu0 0.0
    %597 = vmatprep.subr.mxu0 0.0
    %598 = vmatpush2.msra.mxu0 0.0
    %599 = vmatprep.subr.mxu0 0.0
    %600 = vmatpush2.msra.mxu0 0.0
    %601 = vmatprep.subr.mxu0 0.0
    %602 = vmatpush2.msra.mxu0 0.0
    %603 = vmatprep.subr.mxu0 0.0
    %604 = vmatpush2.msra.mxu0 0.0
    %605 = vmatprep.subr.mxu0 0.0
    %606 = vmatpush2.msra.mxu0 0.0
    %607 = vmatprep.subr.mxu0 0.0
    %608 = vmatpush2.msra.mxu0 0.0
    %609 = vmatprep.subr.mxu0 0.0
    %610 = vmatpush2.msra.mxu0 0.0
    %611 = vmatprep.subr.mxu0 0.0
    %612 = vmatpush2.msra.mxu0 0.0
    %613 = vmatprep.subr.mxu0 0.0
    %614 = vmatpush2.msra.mxu0 0.0
    %615 = vmatprep.subr.mxu0 0.0
    %616 = vmatpush2.msra.mxu0 0.0
    %617 = vmatprep.subr.mxu0 0.0
    %618 = vmatpush2.msra.mxu0 0.0
    %619 = vmatprep.subr.mxu0 0.0
    %620 = vmatpush2.msra.mxu0 0.0
    %621 = vmatprep.subr.mxu0 0.0
    %622 = vmatpush2.msra.mxu0 0.0
    %623 = vmatprep.mubr.f32.mxu0 0.0
    %624 = vmatmul.mubr.f32.gmra.mxu0 %v486
    %v625 = vpop.f32.mrf.mxu0
    %v626 = vadd.f32 0.0, %v625
    %v627 = vpop.f32.mrf.mxu0
    %v628 = vadd.f32 0.0, %v627
    %629 = vdwg.mxu0
    %v630 = vld [vmem:[%s7] sm:$0xff]
    %v631 = vld [vmem:[%s8] sm:$0xff]
    %v632 = vadd.f32 %v555, %v557
    %v633 = vadd.f32 %v632, %v626
    %v634 = vadd.f32 %v633, %v628
    %635 = vadd.xlane.f32.xlu0 %v634
    %v636 = vpop.xlane.xlu0 %635
    %v637 = vmul.f32 %v636, 0.001953125
    %v638 = vmul.f32 %v555, %v555
    %v639 = vmul.f32 %v557, %v557
    %v640 = vmul.f32 %v626, %v626
    %v641 = vmul.f32 %v628, %v628
    %v642 = vadd.f32 %v638, %v639
    %v643 = vadd.f32 %v642, %v640
    %v644 = vadd.f32 %v643, %v641
    %645 = vadd.xlane.f32.xlu0 %v644
    %v646 = vpop.xlane.xlu0 %645
    %v647 = vmul.f32 %v646, 0.001953125
    %v648 = vmul.f32 %v637, %v637
    %v649 = vsub.f32 %v647, %v648
    %v650 = vadd.f32 %v649, 1e-05
    %v651 = vrsqrt.pop %v650
    %v652 = vmul.f32 %v630, %v651
    %v653 = vmul.f32 %v637, %v652
    %v654 = vsub.f32 %v631, %v653
    %656 = vset.pattern.permute.xlu0 0
    %657 = vperm.xlu0 %656, %v652
    %v658 = vpop.permute.xlu0 %657
    %v660 = vmul.f32 %v555, %v658
    %v661 = vmul.f32 %v557, %v658
    %v662 = vmul.f32 %v626, %v658
    %v663 = vmul.f32 %v628, %v658
    %665 = vset.pattern.permute.xlu0 0
    %666 = vperm.xlu0 %665, %v654
    %v667 = vpop.permute.xlu0 %666
    %v669 = vadd.f32 %v660, %v667
    %v670 = vadd.f32 %v661, %v667
    %v671 = vadd.f32 %v662, %v667
    %v672 = vadd.f32 %v663, %v667
    %v673 = vmax.f32 %v669, 0.0
    %v674 = vmax.f32 %v670, 0.0
    %v675 = vmax.f32 %v671, 0.0
    %v676 = vmax.f32 %v672, 0.0
    %v677 = vld [vmem:[#allocation7] sm:$0xff]
    %678 = vrot.lane.b32.xlu0 %v673, 17
    %v679 = vpop.permute.xlu0 %678
    %680 = vrot.lane.b32.xlu0 %v674, 17
    %v681 = vpop.permute.xlu0 %680
    %682 = vrot.lane.b32.xlu0 %v675, 17
    %v683 = vpop.permute.xlu0 %682
    %684 = vrot.lane.b32.xlu0 %v676, 17
    %v685 = vpop.permute.xlu0 %684
    %v686 = vsel %vm140, %v683, %v685
    %v687 = vsel %vm140, %v681, %v683
    %v688 = vsel %vm140, %v679, %v681
    %v689 = vsel %vm140, %v685, %v679
    %v690 = vsel %vm163, %v689, 0.0
    %v691 = vsel %vm164, %v688, 0.0
    %v692 = vsel %vm165, %v687, 0.0
    %v693 = vsel %vm166, %v686, 0.0
    %694 = vrot.lane.b32.xlu0 %v673, 16
    %v695 = vpop.permute.xlu0 %694
    %696 = vrot.lane.b32.xlu0 %v674, 16
    %v697 = vpop.permute.xlu0 %696
    %698 = vrot.lane.b32.xlu0 %v675, 16
    %v699 = vpop.permute.xlu0 %698
    %700 = vrot.lane.b32.xlu0 %v676, 16
    %v701 = vpop.permute.xlu0 %700
    %v702 = vsel %vm182, %v699, %v701
    %v703 = vsel %vm182, %v697, %v699
    %v704 = vsel %vm182, %v695, %v697
    %v705 = vsel %vm182, %v701, %v695
    %v706 = vsel %vm205, %v705, 0.0
    %v707 = vsel %vm206, %v704, 0.0
    %v708 = vsel %vm207, %v703, 0.0
    %v709 = vsel %vm208, %v702, 0.0
    %710 = vrot.lane.b32.xlu0 %v673, 15
    %v711 = vpop.permute.xlu0 %710
    %712 = vrot.lane.b32.xlu0 %v674, 15
    %v713 = vpop.permute.xlu0 %712
    %714 = vrot.lane.b32.xlu0 %v675, 15
    %v715 = vpop.permute.xlu0 %714
    %716 = vrot.lane.b32.xlu0 %v676, 15
    %v717 = vpop.permute.xlu0 %716
    %v718 = vsel %vm225, %v715, %v717
    %v719 = vsel %vm225, %v713, %v715
    %v720 = vsel %vm225, %v711, %v713
    %v721 = vsel %vm225, %v717, %v711
    %v722 = vsel %vm248, %v721, 0.0
    %v723 = vsel %vm249, %v720, 0.0
    %v724 = vsel %vm250, %v719, 0.0
    %v725 = vsel %vm251, %v718, 0.0
    %726 = vrot.lane.b32.xlu0 %v673, 1
    %v727 = vpop.permute.xlu0 %726
    %728 = vrot.lane.b32.xlu0 %v674, 1
    %v729 = vpop.permute.xlu0 %728
    %730 = vrot.lane.b32.xlu0 %v675, 1
    %v731 = vpop.permute.xlu0 %730
    %732 = vrot.lane.b32.xlu0 %v676, 1
    %v733 = vpop.permute.xlu0 %732
    %v734 = vsel %vm267, %v731, %v733
    %v735 = vsel %vm267, %v729, %v731
    %v736 = vsel %vm267, %v727, %v729
    %v737 = vsel %vm267, %v733, %v727
    %v738 = vsel %vm290, %v737, 0.0
    %v739 = vsel %vm291, %v736, 0.0
    %v740 = vsel %vm292, %v735, 0.0
    %v741 = vsel %vm293, %v734, 0.0
    %v742 = vsel %vm316, %v673, 0.0
    %v743 = vsel %vm317, %v674, 0.0
    %v744 = vsel %vm318, %v675, 0.0
    %v745 = vsel %vm319, %v676, 0.0
    %746 = vrot.lane.b32.xlu0 %v673, 127
    %v747 = vpop.permute.xlu0 %746
    %748 = vrot.lane.b32.xlu0 %v674, 127
    %v749 = vpop.permute.xlu0 %748
    %750 = vrot.lane.b32.xlu0 %v675, 127
    %v751 = vpop.permute.xlu0 %750
    %752 = vrot.lane.b32.xlu0 %v676, 127
    %v753 = vpop.permute.xlu0 %752
    %v754 = vsel %vm332, %v751, %v753
    %v755 = vsel %vm332, %v749, %v751
    %v756 = vsel %vm332, %v747, %v749
    %v757 = vsel %vm332, %v753, %v747
    %v758 = vsel %vm355, %v756, 0.0
    %v759 = vsel %vm356, %v755, 0.0
    %v760 = vsel %vm357, %v754, 0.0
    %v761 = vsel %vm358, %v757, 0.0
    %762 = vrot.lane.b32.xlu0 %v673, 113
    %v763 = vpop.permute.xlu0 %762
    %764 = vrot.lane.b32.xlu0 %v674, 113
    %v765 = vpop.permute.xlu0 %764
    %766 = vrot.lane.b32.xlu0 %v675, 113
    %v767 = vpop.permute.xlu0 %766
    %768 = vrot.lane.b32.xlu0 %v676, 113
    %v769 = vpop.permute.xlu0 %768
    %v770 = vsel %vm375, %v767, %v769
    %v771 = vsel %vm375, %v765, %v767
    %v772 = vsel %vm375, %v763, %v765
    %v773 = vsel %vm375, %v769, %v763
    %v774 = vsel %vm398, %v772, 0.0
    %v775 = vsel %vm399, %v771, 0.0
    %v776 = vsel %vm400, %v770, 0.0
    %v777 = vsel %vm401, %v773, 0.0
    %778 = vrot.lane.b32.xlu0 %v673, 112
    %v779 = vpop.permute.xlu0 %778
    %780 = vrot.lane.b32.xlu0 %v674, 112
    %v781 = vpop.permute.xlu0 %780
    %782 = vrot.lane.b32.xlu0 %v675, 112
    %v783 = vpop.permute.xlu0 %782
    %784 = vrot.lane.b32.xlu0 %v676, 112
    %v785 = vpop.permute.xlu0 %784
    %v786 = vsel %vm414, %v783, %v785
    %v787 = vsel %vm414, %v781, %v783
    %v788 = vsel %vm414, %v779, %v781
    %v789 = vsel %vm414, %v785, %v779
    %v790 = vsel %vm437, %v788, 0.0
    %v791 = vsel %vm438, %v787, 0.0
    %v792 = vsel %vm439, %v786, 0.0
    %v793 = vsel %vm440, %v789, 0.0
    %794 = vrot.lane.b32.xlu0 %v673, 111
    %v795 = vpop.permute.xlu0 %794
    %796 = vrot.lane.b32.xlu0 %v674, 111
    %v797 = vpop.permute.xlu0 %796
    %798 = vrot.lane.b32.xlu0 %v675, 111
    %v799 = vpop.permute.xlu0 %798
    %800 = vrot.lane.b32.xlu0 %v676, 111
    %v801 = vpop.permute.xlu0 %800
    %v802 = vsel %vm453, %v799, %v801
    %v803 = vsel %vm453, %v797, %v799
    %v804 = vsel %vm453, %v795, %v797
    %v805 = vsel %vm453, %v801, %v795
    %v806 = vsel %vm476, %v804, 0.0
    %v807 = vsel %vm477, %v803, 0.0
    %v808 = vsel %vm478, %v802, 0.0
    %v809 = vsel %vm479, %v805, 0.0
    %v811 = vsel %vm484, %v677, 0
    %813 = vmatprep.subr.mxu0 0.0
    %814 = vmatpush1.msra.mxu0 0.0
    %815 = vmatprep.subr.mxu0 0.0
    %816 = vmatpush1.msra.mxu0 0.0
    %817 = vmatprep.subr.mxu0 0.0
    %818 = vmatpush1.msra.mxu0 0.0
    %819 = vmatprep.subr.mxu0 0.0
    %820 = vmatpush1.msra.mxu0 0.0
    %821 = vmatprep.subr.mxu0 0.0
    %822 = vmatpush1.msra.mxu0 0.0
    %823 = vmatprep.subr.mxu0 0.0
    %824 = vmatpush1.msra.mxu0 0.0
    %825 = vmatprep.subr.mxu0 0.0
    %826 = vmatpush1.msra.mxu0 0.0
    %827 = vmatprep.subr.mxu0 %v807
    %828 = vmatpush1.msra.mxu0 %v806
    %829 = vmatprep.subr.mxu0 %v791
    %830 = vmatpush1.msra.mxu0 %v790
    %831 = vmatprep.subr.mxu0 %v775
    %832 = vmatpush1.msra.mxu0 %v774
    %833 = vmatprep.subr.mxu0 %v759
    %834 = vmatpush1.msra.mxu0 %v758
    %835 = vmatprep.subr.mxu0 %v743
    %836 = vmatpush1.msra.mxu0 %v742
    %837 = vmatprep.subr.mxu0 %v739
    %838 = vmatpush1.msra.mxu0 %v738
    %839 = vmatprep.subr.mxu0 %v723
    %840 = vmatpush1.msra.mxu0 %v722
    %841 = vmatprep.subr.mxu0 %v707
    %842 = vmatpush1.msra.mxu0 %v706
    %843 = vmatprep.subr.mxu0 %v691
    %844 = vmatpush1.msra.mxu0 %v690
    %845 = vmatprep.subr.mxu0 0.0
    %846 = vmatpush2.msra.mxu0 0.0
    %847 = vmatprep.subr.mxu0 0.0
    %848 = vmatpush2.msra.mxu0 0.0
    %849 = vmatprep.subr.mxu0 0.0
    %850 = vmatpush2.msra.mxu0 0.0
    %851 = vmatprep.subr.mxu0 0.0
    %852 = vmatpush2.msra.mxu0 0.0
    %853 = vmatprep.subr.mxu0 0.0
    %854 = vmatpush2.msra.mxu0 0.0
    %855 = vmatprep.subr.mxu0 0.0
    %856 = vmatpush2.msra.mxu0 0.0
    %857 = vmatprep.subr.mxu0 0.0
    %858 = vmatpush2.msra.mxu0 0.0
    %859 = vmatprep.subr.mxu0 0.0
    %860 = vmatpush2.msra.mxu0 0.0
    %861 = vmatprep.subr.mxu0 0.0
    %862 = vmatpush2.msra.mxu0 0.0
    %863 = vmatprep.subr.mxu0 0.0
    %864 = vmatpush2.msra.mxu0 0.0
    %865 = vmatprep.subr.mxu0 0.0
    %866 = vmatpush2.msra.mxu0 0.0
    %867 = vmatprep.subr.mxu0 0.0
    %868 = vmatpush2.msra.mxu0 0.0
    %869 = vmatprep.subr.mxu0 0.0
    %870 = vmatpush2.msra.mxu0 0.0
    %871 = vmatprep.subr.mxu0 0.0
    %872 = vmatpush2.msra.mxu0 0.0
    %873 = vmatprep.subr.mxu0 0.0
    %874 = vmatpush2.msra.mxu0 0.0
    %875 = vmatprep.subr.mxu0 0.0
    %876 = vmatpush2.msra.mxu0 0.0
    %877 = vmatprep.mubr.f32.mxu0 0.0
    %878 = vmatmul.mubr.f32.gmra.mxu0 %v811
    %v879 = vpop.f32.mrf.mxu0
    %v880 = vadd.f32 %v68, %v879
    %v881 = vpop.f32.mrf.mxu0
    %v882 = vadd.f32 %v69, %v881
    %883 = vdwg.mxu0
    %884 = vmatprep.subr.mxu0 0.0
    %885 = vmatpush1.msra.mxu0 0.0
    %886 = vmatprep.subr.mxu0 0.0
    %887 = vmatpush1.msra.mxu0 0.0
    %888 = vmatprep.subr.mxu0 0.0
    %889 = vmatpush1.msra.mxu0 0.0
    %890 = vmatprep.subr.mxu0 0.0
    %891 = vmatpush1.msra.mxu0 0.0
    %892 = vmatprep.subr.mxu0 0.0
    %893 = vmatpush1.msra.mxu0 0.0
    %894 = vmatprep.subr.mxu0 0.0
    %895 = vmatpush1.msra.mxu0 0.0
    %896 = vmatprep.subr.mxu0 0.0
    %897 = vmatpush1.msra.mxu0 0.0
    %898 = vmatprep.subr.mxu0 %v809
    %899 = vmatpush1.msra.mxu0 %v808
    %900 = vmatprep.subr.mxu0 %v793
    %901 = vmatpush1.msra.mxu0 %v792
    %902 = vmatprep.subr.mxu0 %v777
    %903 = vmatpush1.msra.mxu0 %v776
    %904 = vmatprep.subr.mxu0 %v761
    %905 = vmatpush1.msra.mxu0 %v760
    %906 = vmatprep.subr.mxu0 %v745
    %907 = vmatpush1.msra.mxu0 %v744
    %908 = vmatprep.subr.mxu0 %v741
    %909 = vmatpush1.msra.mxu0 %v740
    %910 = vmatprep.subr.mxu0 %v725
    %911 = vmatpush1.msra.mxu0 %v724
    %912 = vmatprep.subr.mxu0 %v709
    %913 = vmatpush1.msra.mxu0 %v708
    %914 = vmatprep.subr.mxu0 %v693
    %915 = vmatpush1.msra.mxu0 %v692
    %916 = vmatprep.subr.mxu0 0.0
    %917 = vmatpush2.msra.mxu0 0.0
    %918 = vmatprep.subr.mxu0 0.0
    %919 = vmatpush2.msra.mxu0 0.0
    %920 = vmatprep.subr.mxu0 0.0
    %921 = vmatpush2.msra.mxu0 0.0
    %922 = vmatprep.subr.mxu0 0.0
    %923 = vmatpush2.msra.mxu0 0.0
    %924 = vmatprep.subr.mxu0 0.0
    %925 = vmatpush2.msra.mxu0 0.0
    %926 = vmatprep.subr.mxu0 0.0
    %927 = vmatpush2.msra.mxu0 0.0
    %928 = vmatprep.subr.mxu0 0.0
    %929 = vmatpush2.msra.mxu0 0.0
    %930 = vmatprep.subr.mxu0 0.0
    %931 = vmatpush2.msra.mxu0 0.0
    %932 = vmatprep.subr.mxu0 0.0
    %933 = vmatpush2.msra.mxu0 0.0
    %934 = vmatprep.subr.mxu0 0.0
    %935 = vmatpush2.msra.mxu0 0.0
    %936 = vmatprep.subr.mxu0 0.0
    %937 = vmatpush2.msra.mxu0 0.0
    %938 = vmatprep.subr.mxu0 0.0
    %939 = vmatpush2.msra.mxu0 0.0
    %940 = vmatprep.subr.mxu0 0.0
    %941 = vmatpush2.msra.mxu0 0.0
    %942 = vmatprep.subr.mxu0 0.0
    %943 = vmatpush2.msra.mxu0 0.0
    %944 = vmatprep.subr.mxu0 0.0
    %945 = vmatpush2.msra.mxu0 0.0
    %946 = vmatprep.subr.mxu0 0.0
    %947 = vmatpush2.msra.mxu0 0.0
    %948 = vmatprep.mubr.f32.mxu0 0.0
    %949 = vmatmul.mubr.f32.gmra.mxu0 %v811
    %v950 = vpop.f32.mrf.mxu0
    %v951 = vadd.f32 %v70, %v950
    %v952 = vpop.f32.mrf.mxu0
    %v953 = vadd.f32 %v71, %v952
    %954 = vdwg.mxu0
    %955 = vst [vmem:[#allocation8] sm:$0xff] %v880
    %956 = vst [vmem:[#allocation8 + $0x8] sm:$0xff] %v882
    %957 = vst [vmem:[#allocation8 + $0x10] sm:$0xff] %v951
    %958 = vst [vmem:[#allocation8 + $0x18] sm:$0xff] %v953
    // Predicated region
    $region50: #{tpu_custom_call.1} parent=1 // pred_check
      _
    $region51: #{tpu_custom_call.1} parent=1 // pred_check_branch
      %960 = sbr.rel (0) target = $region53
    $region52: #{tpu_custom_call.1} parent=1 // pred_region
      %s962 = ssub.s32 512, 512
      %963 = vsyncadd [#allocation4], %s962
      %s965 = sshll.u32 [#allocation8], 4
      %s966 = int_to_ptr.vmem [resolvable:$true] %s965
      %968 = dma.vmem_to_hbm [thread:$0]  %s966, 512, %s9, [#allocation4]
    $region53: #{tpu_custom_call.1} parent=1 // pred_fallthru
      _
    // Predicated region
    $region54: #{tpu_custom_call.1} parent=1 // pred_check
      _
    $region55: #{tpu_custom_call.1} parent=1 // pred_check_branch
      %970 = sbr.rel (0) target = $region57
    $region56: #{tpu_custom_call.1} parent=1 // pred_region
      %971 = dma.done [#allocation4], 512
    $region57: #{tpu_custom_call.1} parent=1 // pred_fallthru
      _
    %972 = vsyncpa [#allocation3], 1
    %973 = vsyncpa [#allocation6], 1
    %974 = vsyncpa [#allocation4], 1

</llo_original>
